<compile_context>
chip_gen: v7x
topology: tpu7x:2x2x1
jax: 0.10.0
libtpu: 0.0.40
codegen_flags: <defaults>
</compile_context>

<pallas_src>
import numpy as np
import jax
import jax.numpy as jnp
from jax.experimental import pallas as pl
from jax.experimental.pallas import tpu as pltpu  # noqa: F401  (kept for TPU backend import)

# ----------------------------- configuration -----------------------------
B = 2              # batch
Q_LEN = 16         # sequence length (q_len)
D_MODEL = 32       # d_model (C)
N_HEADS = 4
D_FF = 64
WINDOW_SIZE = 8
SHIFT = True       # constructor shift_size != 0  ->  internal shift = window_size // 2
HEAD_DIM = D_MODEL // N_HEADS
SCALE = HEAD_DIM ** -0.5
BN_EPS = 1e-5
M_ROWS = B * Q_LEN
NEG_BIG = -1e9     # "different window / different batch" -> exp underflows to exactly 0


# --------------------- shifted-window mask (setup glue) -------------------
def compute_mask_np(L, window_size, shift_size):
    Lp = int(np.ceil(L / window_size)) * window_size
    img_mask = np.zeros((1, Lp, 1), dtype=np.float32)
    pad_size = int(Lp - L)
    if pad_size == 0 or pad_size + shift_size == window_size:
        segs = (slice(-window_size), slice(-window_size, -shift_size),
                slice(-shift_size, None))
    elif pad_size + shift_size > window_size:
        seg1 = int(window_size * 2 - L + shift_size)
        segs = (slice(-seg1), slice(-seg1, -window_size),
                slice(-window_size, -shift_size), slice(-shift_size, None))
    else:
        seg1 = int(window_size * 2 - L + shift_size)
        segs = (slice(-window_size), slice(-window_size, -seg1),
                slice(-seg1, -shift_size), slice(-shift_size, None))
    cnt = 0
    for d in segs:
        img_mask[:, d, :] = cnt
        cnt += 1
    mw = img_mask.reshape(1, Lp // window_size, window_size, 1).reshape(-1, window_size)
    attn_mask = mw[:, None, :] - mw[:, :, None]
    attn_mask = np.where(attn_mask != 0, np.float32(-100.0), np.float32(0.0))
    return attn_mask.astype(np.float32)


def build_attn_bias(rpb_table_np, L, ws, shift, n_heads, batch):
    """Fold pad/shift/window-partition/rel-pos-bias/shift-mask into one additive
    (n_heads, batch*L, batch*L) score bias (block-diagonal over batch & window)."""
    Lp = int(np.ceil(L / ws)) * ws
    # TODO(synk): padded case (Lp > L) would require materializing zero pad-rows as keys;
    # not needed for this configuration (L is a multiple of window_size).
    assert Lp == L, "fused bias formulation assumes no padding"
    nW = Lp // ws

    # shifted index of each original position, its window and in-window position
    si = (np.arange(L) - shift) % Lp
    w_idx = si // ws
    pos = si % ws

    if shift > 0:
        mask = compute_mask_np(L, ws, shift)                    # (nW, ws, ws)
    else:
        mask = np.zeros((nW, ws, ws), np.float32)

    # relative position bias: rel[h, i, j] = table[i - j + ws - 1, h]
    idx = np.arange(ws)[:, None] - np.arange(ws)[None, :] + ws - 1
    rel = np.transpose(rpb_table_np[idx], (2, 0, 1)).astype(np.float32)   # (H, ws, ws)

    per_batch = np.full((n_heads, L, L), NEG_BIG, np.float32)
    for i in range(L):
        for j in range(L):
            if w_idx[i] == w_idx[j]:
                w = w_idx[i]
                per_batch[:, i, j] = rel[:, pos[i], pos[j]] + mask[w, pos[i], pos[j]]

    M = batch * L
    full = np.full((n_heads, M, M), NEG_BIG, np.float32)
    for b in range(batch):
        full[:, b * L:(b + 1) * L, b * L:(b + 1) * L] = per_batch
    return full


# ------------------------------ Pallas kernel -----------------------------
def _gelu_erf(x):
    # nn.GELU() exact form via odd-function identity (no sign/where/select):
    #   GELU(x) = 0.5*x*(1 + erf(x/sqrt(2))) = 0.5*x + 0.5*|x|*erf(|x|/sqrt(2))
    # erf on [0, inf): Abramowitz & Stegun 7.1.26, |err| < 1.5e-7.
    ax = jnp.abs(x)
    z = ax * 0.7071067811865476
    t = 1.0 / (1.0 + 0.3275911 * z)
    poly = ((((1.061405429 * t - 1.453152027) * t + 1.421413741) * t
             - 0.284496736) * t + 0.254829592) * t
    erf_z = 1.0 - poly * jnp.exp(-z * z)
    return 0.5 * x + 0.5 * ax * erf_z


def _tst_layer_kernel(x_ref, wqkv_ref, bias_ref, wproj_ref, w1_ref, w2_ref, pvec_ref, o_ref):
    C = D_MODEL
    H = N_HEADS
    M = M_ROWS

    x = x_ref[...]                                                     # (M, C)
    pvec = pvec_ref[...]                                               # (16, 128) packed params

    bqkv = pvec[0:1, 0:3 * C]                                          # (1, 3C)
    bproj = pvec[1:2, 0:C]                                             # (1, C)
    b1 = pvec[2:3, 0:D_FF]                                             # (1, D_FF)
    b2 = pvec[3:4, 0:C]                                                # (1, C)
    g1 = pvec[4:5, 0:C]
    be1 = pvec[5:6, 0:C]
    g2 = pvec[6:7, 0:C]
    be2 = pvec[7:8, 0:C]
    cms = [pvec[8 + h:9 + h, 0:C] for h in range(H)]                   # per-head column masks

    # ---- window attention: all heads / windows / batches in 4 big MXU matmuls ----
    # q-scale is pre-folded into the first C columns of wqkv / bqkv.
    qkv = jnp.dot(x, wqkv_ref[...], preferred_element_type=jnp.float32) + bqkv   # (M, 3C)
    q = qkv[:, 0:C]
    k = qkv[:, C:2 * C]
    v = qkv[:, 2 * C:3 * C]

    # Heads stacked along rows: row block h holds q with only head-h feature columns kept,
    # so one (H*M, C) x (M, C)^T contraction yields every head's (M, M) score block at once.
    q_bd = jnp.concatenate([q * cms[h] for h in range(H)], axis=0)     # (H*M, C)
    s = jax.lax.dot_general(q_bd, k, (((1,), (1,)), ((), ())),
                            preferred_element_type=jnp.float32)        # (H*M, M)
    # fused bias: rel-pos-bias + shift mask in-window, -1e9 for cross-window / cross-batch
    s = s + bias_ref[...]
    s = s - jnp.max(s, axis=-1, keepdims=True)
    p = jnp.exp(s)
    p = p * pl.reciprocal(jnp.sum(p, axis=-1, keepdims=True), approx=True)

    # All heads' P @ V in one matmul; head h's true output sits in row block h, column block h.
    pv = jnp.dot(p, v, preferred_element_type=jnp.float32)             # (H*M, C)
    concat = pv[0:M, :] * cms[0]                                        # head-concat via masks
    for h in range(1, H):
        concat = concat + pv[h * M:(h + 1) * M, :] * cms[h]            # (M, C)
    attn_out = jnp.dot(concat, wproj_ref[...],
                       preferred_element_type=jnp.float32) + bproj     # (M, C)

    # ---- residual + BatchNorm1d (batch statistics over B*L, biased variance) ----
    s1 = x + attn_out
    m1 = jnp.mean(s1, axis=0, keepdims=True)
    c1 = s1 - m1
    v1 = jnp.mean(c1 * c1, axis=0, keepdims=True)
    y1 = c1 * jax.lax.rsqrt(v1 + BN_EPS) * g1 + be1

    # ---- feed-forward: Linear -> GELU -> Linear ----
    hid = jnp.dot(y1, w1_ref[...], preferred_element_type=jnp.float32) + b1
    hid = _gelu_erf(hid)
    ff = jnp.dot(hid, w2_ref[...], preferred_element_type=jnp.float32) + b2

    # ---- residual + BatchNorm1d ----
    s2 = y1 + ff
    m2 = jnp.mean(s2, axis=0, keepdims=True)
    c2 = s2 - m2
    v2 = jnp.mean(c2 * c2, axis=0, keepdims=True)
    o_ref[...] = (c2 * jax.lax.rsqrt(v2 + BN_EPS) * g2 + be2).astype(o_ref.dtype)


# ------------------------------- wrapper -----------------------------------
def tst_encoder_layer(src, p):
    Bb, L, C = src.shape
    M = Bb * L
    # grid-less pallas_call: kernel runs once, every operand lives whole in VMEM,
    # no pipeline prologue/epilogue or redundant double-buffering.
    out = pl.pallas_call(
        _tst_layer_kernel,
        out_shape=jax.ShapeDtypeStruct((M, C), jnp.float32),
    )(src.reshape(M, C), p["wqkv_t"], p["attn_bias"], p["wproj_t"],
      p["w1_t"], p["w2_t"], p["pvec"])
    return out.reshape(Bb, L, C)


# --------------------------- parameter setup ------------------------------
def init_params(key):
    ks = jax.random.split(key, 9)
    s = 0.05
    # PyTorch nn.Linear stores (out, in); we pre-transpose so the kernel does x @ W.
    wqkv = jax.random.normal(ks[0], (3 * D_MODEL, D_MODEL), jnp.float32) * s
    bqkv = jax.random.normal(ks[1], (3 * D_MODEL,), jnp.float32) * s
    wproj = jax.random.normal(ks[2], (D_MODEL, D_MODEL), jnp.float32) * s
    bproj = jax.random.normal(ks[3], (D_MODEL,), jnp.float32) * s
    # TODO(synk): trunc_normal_(std=0.02) approximated with plain normal (deterministic).
    rpb_table = jax.random.normal(ks[4], (2 * WINDOW_SIZE - 1, N_HEADS), jnp.float32) * 0.02
    w1 = jax.random.normal(ks[5], (D_FF, D_MODEL), jnp.float32) * s
    b1 = jax.random.normal(ks[6], (D_FF,), jnp.float32) * s
    w2 = jax.random.normal(ks[7], (D_MODEL, D_FF), jnp.float32) * s
    b2 = jax.random.normal(ks[8], (D_MODEL,), jnp.float32) * s

    # fold q-scale into the q block of the QKV projection
    wqkv_t = np.asarray(wqkv).T.copy()                 # (C, 3C): [q | k | v] columns
    bqkv_np = np.asarray(bqkv).copy()
    wqkv_t[:, :D_MODEL] *= SCALE
    bqkv_np[:D_MODEL] *= SCALE

    shift = WINDOW_SIZE // 2 if SHIFT else 0
    attn_bias = build_attn_bias(np.asarray(rpb_table), Q_LEN, WINDOW_SIZE,
                                shift, N_HEADS, B)                     # (H, B*L, B*L)
    attn_bias = attn_bias.reshape(N_HEADS * M_ROWS, M_ROWS)            # heads stacked on rows

    # pack every tiny (1, N) parameter vector + per-head column masks into ONE (16,128) tile
    pvec = np.zeros((16, 128), np.float32)
    pvec[0, :3 * D_MODEL] = bqkv_np                     # qkv bias (scale folded into q part)
    pvec[1, :D_MODEL] = np.asarray(bproj)               # proj bias
    pvec[2, :D_FF] = np.asarray(b1)                     # ff1 bias
    pvec[3, :D_MODEL] = np.asarray(b2)                  # ff2 bias
    pvec[4, :D_MODEL] = 1.0                             # bn1 gamma (BatchNorm1d default)
    pvec[5, :D_MODEL] = 0.0                             # bn1 beta
    pvec[6, :D_MODEL] = 1.0                             # bn2 gamma
    pvec[7, :D_MODEL] = 0.0                             # bn2 beta
    for h in range(N_HEADS):                            # per-head feature-column masks
        pvec[8 + h, h * HEAD_DIM:(h + 1) * HEAD_DIM] = 1.0

    return dict(
        wqkv_t=jnp.asarray(wqkv_t),                                    # (C, 3C)
        wproj_t=jnp.asarray(np.asarray(wproj).T.copy()),               # (C, C)
        w1_t=jnp.asarray(np.asarray(w1).T.copy()),                     # (C, D_FF)
        w2_t=jnp.asarray(np.asarray(w2).T.copy()),                     # (D_FF, C)
        attn_bias=jnp.asarray(attn_bias),                              # (H*B*L, B*L)
        pvec=jnp.asarray(pvec),                                        # (16, 128)
    )


# --------------------------------- main ------------------------------------
if __name__ == "__main__":
    key = jax.random.PRNGKey(0)
    pkey, xkey = jax.random.split(key)
    params = init_params(pkey)
    src = jax.random.normal(xkey, (B, Q_LEN, D_MODEL), jnp.float32)

    layer = jax.jit(tst_encoder_layer)
    out = jax.block_until_ready(layer(src, params))

    assert out.shape == (B, Q_LEN, D_MODEL), out.shape
    assert bool(jnp.all(jnp.isfinite(out)))
    print("KERNEL_OK")
</pallas_src>

<mosaic_0001>
module attributes {stable_mosaic.version = 11 : i64} {
  func.func @_tst_layer_kernel(%arg0: memref<32x32xf32, #tpu.memory_space<vmem>>, %arg1: memref<32x96xf32, #tpu.memory_space<vmem>>, %arg2: memref<128x32xf32, #tpu.memory_space<vmem>>, %arg3: memref<32x32xf32, #tpu.memory_space<vmem>>, %arg4: memref<32x64xf32, #tpu.memory_space<vmem>>, %arg5: memref<64x32xf32, #tpu.memory_space<vmem>>, %arg6: memref<16x128xf32, #tpu.memory_space<vmem>>, %arg7: memref<32x32xf32, #tpu.memory_space<vmem>>) attributes {dimension_semantics = [], scalar_prefetch = 0 : i64, scratch_operands = 0 : i64, tpu.core_type = #tpu.core_type<tc>} {
    %c0 = arith.constant 0 : index
    %c0_0 = arith.constant 0 : index
    %0 = vector.load %arg0[%c0, %c0_0] : memref<32x32xf32, #tpu.memory_space<vmem>>, vector<32x32xf32>
    %c0_1 = arith.constant 0 : index
    %c0_2 = arith.constant 0 : index
    %1 = vector.load %arg6[%c0_1, %c0_2] : memref<16x128xf32, #tpu.memory_space<vmem>>, vector<16x128xf32>
    %2 = vector.extract_strided_slice %1 {offsets = [0, 0], sizes = [1, 96], strides = [1, 1]} : vector<16x128xf32> to vector<1x96xf32>
    %3 = vector.extract_strided_slice %1 {offsets = [1, 0], sizes = [1, 32], strides = [1, 1]} : vector<16x128xf32> to vector<1x32xf32>
    %4 = vector.extract_strided_slice %1 {offsets = [2, 0], sizes = [1, 64], strides = [1, 1]} : vector<16x128xf32> to vector<1x64xf32>
    %5 = vector.extract_strided_slice %1 {offsets = [3, 0], sizes = [1, 32], strides = [1, 1]} : vector<16x128xf32> to vector<1x32xf32>
    %6 = vector.extract_strided_slice %1 {offsets = [4, 0], sizes = [1, 32], strides = [1, 1]} : vector<16x128xf32> to vector<1x32xf32>
    %7 = vector.extract_strided_slice %1 {offsets = [5, 0], sizes = [1, 32], strides = [1, 1]} : vector<16x128xf32> to vector<1x32xf32>
    %8 = vector.extract_strided_slice %1 {offsets = [6, 0], sizes = [1, 32], strides = [1, 1]} : vector<16x128xf32> to vector<1x32xf32>
    %9 = vector.extract_strided_slice %1 {offsets = [7, 0], sizes = [1, 32], strides = [1, 1]} : vector<16x128xf32> to vector<1x32xf32>
    %10 = vector.extract_strided_slice %1 {offsets = [8, 0], sizes = [1, 32], strides = [1, 1]} : vector<16x128xf32> to vector<1x32xf32>
    %11 = vector.extract_strided_slice %1 {offsets = [9, 0], sizes = [1, 32], strides = [1, 1]} : vector<16x128xf32> to vector<1x32xf32>
    %12 = vector.extract_strided_slice %1 {offsets = [10, 0], sizes = [1, 32], strides = [1, 1]} : vector<16x128xf32> to vector<1x32xf32>
    %13 = vector.extract_strided_slice %1 {offsets = [11, 0], sizes = [1, 32], strides = [1, 1]} : vector<16x128xf32> to vector<1x32xf32>
    %c0_3 = arith.constant 0 : index
    %c0_4 = arith.constant 0 : index
    %14 = vector.load %arg1[%c0_3, %c0_4] : memref<32x96xf32, #tpu.memory_space<vmem>>, vector<32x96xf32>
    %cst = arith.constant dense<0.000000e+00> : vector<32x96xf32>
    %15 = tpu.matmul %0, %14, %cst {dimension_numbers = #tpu.dot_dimension_numbers<[1], [0], [0], [1], [0, 0, 1, 1], [], []>} : vector<32x32xf32>, vector<32x96xf32>, vector<32x96xf32> -> vector<32x96xf32>
    %16 = vector.broadcast %2 : vector<1x96xf32> to vector<32x96xf32>
    %17 = arith.addf %15, %16 : vector<32x96xf32>
    %18 = vector.extract_strided_slice %17 {offsets = [0, 0], sizes = [32, 32], strides = [1, 1]} : vector<32x96xf32> to vector<32x32xf32>
    %19 = vector.extract_strided_slice %17 {offsets = [0, 32], sizes = [32, 32], strides = [1, 1]} : vector<32x96xf32> to vector<32x32xf32>
    %20 = vector.extract_strided_slice %17 {offsets = [0, 64], sizes = [32, 32], strides = [1, 1]} : vector<32x96xf32> to vector<32x32xf32>
    %21 = vector.broadcast %10 : vector<1x32xf32> to vector<32x32xf32>
    %22 = arith.mulf %18, %21 : vector<32x32xf32>
    %23 = vector.broadcast %11 : vector<1x32xf32> to vector<32x32xf32>
    %24 = arith.mulf %18, %23 : vector<32x32xf32>
    %25 = vector.broadcast %12 : vector<1x32xf32> to vector<32x32xf32>
    %26 = arith.mulf %18, %25 : vector<32x32xf32>
    %27 = vector.broadcast %13 : vector<1x32xf32> to vector<32x32xf32>
    %28 = arith.mulf %18, %27 : vector<32x32xf32>
    %29 = tpu.concatenate %22, %24, %26, %28 in 0 : vector<32x32xf32>, vector<32x32xf32>, vector<32x32xf32>, vector<32x32xf32> -> vector<128x32xf32>
    %cst_5 = arith.constant dense<0.000000e+00> : vector<128x32xf32>
    %30 = tpu.matmul %29, %19, %cst_5 {dimension_numbers = #tpu.dot_dimension_numbers<[1], [1], [0], [0], [0, 0, 1, 0], [], []>} : vector<128x32xf32>, vector<32x32xf32>, vector<128x32xf32> -> vector<128x32xf32>
    %c0_6 = arith.constant 0 : index
    %c0_7 = arith.constant 0 : index
    %31 = vector.load %arg2[%c0_6, %c0_7] : memref<128x32xf32, #tpu.memory_space<vmem>>, vector<128x32xf32>
    %32 = arith.addf %30, %31 : vector<128x32xf32>
    %cst_8 = arith.constant dense<0xFF800000> : vector<128xf32>
    %33 = vector.multi_reduction <maximumf>, %32, %cst_8 [1] : vector<128x32xf32> to vector<128xf32>
    %34 = vector.shape_cast %33 : vector<128xf32> to vector<128x1xf32>
    %35 = vector.broadcast %34 : vector<128x1xf32> to vector<128x32xf32>
    %36 = arith.subf %32, %35 : vector<128x32xf32>
    %37 = math.exp %36 : vector<128x32xf32>
    %cst_9 = arith.constant dense<0.000000e+00> : vector<128xf32>
    %38 = vector.multi_reduction <add>, %37, %cst_9 [1] : vector<128x32xf32> to vector<128xf32>
    %39 = vector.shape_cast %38 : vector<128xf32> to vector<128x1xf32>
    %40 = tpu.reciprocal %39 {approx = true} : vector<128x1xf32> -> vector<128x1xf32>
    %41 = vector.broadcast %40 : vector<128x1xf32> to vector<128x32xf32>
    %42 = arith.mulf %37, %41 : vector<128x32xf32>
    %cst_10 = arith.constant dense<0.000000e+00> : vector<128x32xf32>
    %43 = tpu.matmul %42, %20, %cst_10 {dimension_numbers = #tpu.dot_dimension_numbers<[1], [0], [0], [1], [0, 0, 1, 1], [], []>} : vector<128x32xf32>, vector<32x32xf32>, vector<128x32xf32> -> vector<128x32xf32>
    %44 = vector.extract_strided_slice %43 {offsets = [0, 0], sizes = [32, 32], strides = [1, 1]} : vector<128x32xf32> to vector<32x32xf32>
    %45 = vector.broadcast %10 : vector<1x32xf32> to vector<32x32xf32>
    %46 = arith.mulf %44, %45 : vector<32x32xf32>
    %47 = vector.extract_strided_slice %43 {offsets = [32, 0], sizes = [32, 32], strides = [1, 1]} : vector<128x32xf32> to vector<32x32xf32>
    %48 = vector.broadcast %11 : vector<1x32xf32> to vector<32x32xf32>
    %49 = arith.mulf %47, %48 : vector<32x32xf32>
    %50 = arith.addf %46, %49 : vector<32x32xf32>
    %51 = vector.extract_strided_slice %43 {offsets = [64, 0], sizes = [32, 32], strides = [1, 1]} : vector<128x32xf32> to vector<32x32xf32>
    %52 = vector.broadcast %12 : vector<1x32xf32> to vector<32x32xf32>
    %53 = arith.mulf %51, %52 : vector<32x32xf32>
    %54 = arith.addf %50, %53 : vector<32x32xf32>
    %55 = vector.extract_strided_slice %43 {offsets = [96, 0], sizes = [32, 32], strides = [1, 1]} : vector<128x32xf32> to vector<32x32xf32>
    %56 = vector.broadcast %13 : vector<1x32xf32> to vector<32x32xf32>
    %57 = arith.mulf %55, %56 : vector<32x32xf32>
    %58 = arith.addf %54, %57 : vector<32x32xf32>
    %c0_11 = arith.constant 0 : index
    %c0_12 = arith.constant 0 : index
    %59 = vector.load %arg3[%c0_11, %c0_12] : memref<32x32xf32, #tpu.memory_space<vmem>>, vector<32x32xf32>
    %cst_13 = arith.constant dense<0.000000e+00> : vector<32x32xf32>
    %60 = tpu.matmul %58, %59, %cst_13 {dimension_numbers = #tpu.dot_dimension_numbers<[1], [0], [0], [1], [0, 0, 1, 1], [], []>} : vector<32x32xf32>, vector<32x32xf32>, vector<32x32xf32> -> vector<32x32xf32>
    %61 = vector.broadcast %3 : vector<1x32xf32> to vector<32x32xf32>
    %62 = arith.addf %60, %61 : vector<32x32xf32>
    %63 = arith.addf %0, %62 : vector<32x32xf32>
    %cst_14 = arith.constant dense<0.000000e+00> : vector<32xf32>
    %64 = vector.multi_reduction <add>, %63, %cst_14 [0] : vector<32x32xf32> to vector<32xf32>
    %65 = vector.shape_cast %64 : vector<32xf32> to vector<1x32xf32>
    %cst_15 = arith.constant 3.200000e+01 : f32
    %66 = vector.broadcast %cst_15 : f32 to vector<1x32xf32>
    %67 = arith.divf %65, %66 : vector<1x32xf32>
    %68 = vector.broadcast %67 : vector<1x32xf32> to vector<32x32xf32>
    %69 = arith.subf %63, %68 : vector<32x32xf32>
    %70 = arith.mulf %69, %69 : vector<32x32xf32>
    %cst_16 = arith.constant dense<0.000000e+00> : vector<32xf32>
    %71 = vector.multi_reduction <add>, %70, %cst_16 [0] : vector<32x32xf32> to vector<32xf32>
    %72 = vector.shape_cast %71 : vector<32xf32> to vector<1x32xf32>
    %cst_17 = arith.constant 3.200000e+01 : f32
    %73 = vector.broadcast %cst_17 : f32 to vector<1x32xf32>
    %74 = arith.divf %72, %73 : vector<1x32xf32>
    %cst_18 = arith.constant 9.99999974E-6 : f32
    %75 = vector.broadcast %cst_18 : f32 to vector<1x32xf32>
    %76 = arith.addf %74, %75 : vector<1x32xf32>
    %77 = math.rsqrt %76 : vector<1x32xf32>
    %78 = vector.broadcast %77 : vector<1x32xf32> to vector<32x32xf32>
    %79 = arith.mulf %69, %78 : vector<32x32xf32>
    %80 = vector.broadcast %6 : vector<1x32xf32> to vector<32x32xf32>
    %81 = arith.mulf %79, %80 : vector<32x32xf32>
    %82 = vector.broadcast %7 : vector<1x32xf32> to vector<32x32xf32>
    %83 = arith.addf %81, %82 : vector<32x32xf32>
    %c0_19 = arith.constant 0 : index
    %c0_20 = arith.constant 0 : index
    %84 = vector.load %arg4[%c0_19, %c0_20] : memref<32x64xf32, #tpu.memory_space<vmem>>, vector<32x64xf32>
    %cst_21 = arith.constant dense<0.000000e+00> : vector<32x64xf32>
    %85 = tpu.matmul %83, %84, %cst_21 {dimension_numbers = #tpu.dot_dimension_numbers<[1], [0], [0], [1], [0, 0, 1, 1], [], []>} : vector<32x32xf32>, vector<32x64xf32>, vector<32x64xf32> -> vector<32x64xf32>
    %86 = vector.broadcast %4 : vector<1x64xf32> to vector<32x64xf32>
    %87 = arith.addf %85, %86 : vector<32x64xf32>
    %88 = math.absf %87 : vector<32x64xf32>
    %cst_22 = arith.constant 0.707106769 : f32
    %89 = vector.broadcast %cst_22 : f32 to vector<32x64xf32>
    %90 = arith.mulf %88, %89 : vector<32x64xf32>
    %cst_23 = arith.constant 0.327591091 : f32
    %91 = vector.broadcast %cst_23 : f32 to vector<32x64xf32>
    %92 = arith.mulf %91, %90 : vector<32x64xf32>
    %cst_24 = arith.constant 1.000000e+00 : f32
    %93 = vector.broadcast %cst_24 : f32 to vector<32x64xf32>
    %94 = arith.addf %93, %92 : vector<32x64xf32>
    %cst_25 = arith.constant 1.000000e+00 : f32
    %95 = vector.broadcast %cst_25 : f32 to vector<32x64xf32>
    %96 = arith.divf %95, %94 : vector<32x64xf32>
    %cst_26 = arith.constant 1.06140542 : f32
    %97 = vector.broadcast %cst_26 : f32 to vector<32x64xf32>
    %98 = arith.mulf %97, %96 : vector<32x64xf32>
    %cst_27 = arith.constant 1.45315206 : f32
    %99 = vector.broadcast %cst_27 : f32 to vector<32x64xf32>
    %100 = arith.subf %98, %99 : vector<32x64xf32>
    %101 = arith.mulf %100, %96 : vector<32x64xf32>
    %cst_28 = arith.constant 1.42141378 : f32
    %102 = vector.broadcast %cst_28 : f32 to vector<32x64xf32>
    %103 = arith.addf %101, %102 : vector<32x64xf32>
    %104 = arith.mulf %103, %96 : vector<32x64xf32>
    %cst_29 = arith.constant 0.284496725 : f32
    %105 = vector.broadcast %cst_29 : f32 to vector<32x64xf32>
    %106 = arith.subf %104, %105 : vector<32x64xf32>
    %107 = arith.mulf %106, %96 : vector<32x64xf32>
    %cst_30 = arith.constant 0.254829586 : f32
    %108 = vector.broadcast %cst_30 : f32 to vector<32x64xf32>
    %109 = arith.addf %107, %108 : vector<32x64xf32>
    %110 = arith.mulf %109, %96 : vector<32x64xf32>
    %cst_31 = arith.constant 0.000000e+00 : f32
    %111 = vector.broadcast %cst_31 : f32 to vector<32x64xf32>
    %112 = arith.subf %111, %90 : vector<32x64xf32>
    %113 = arith.mulf %112, %90 : vector<32x64xf32>
    %114 = math.exp %113 : vector<32x64xf32>
    %115 = arith.mulf %110, %114 : vector<32x64xf32>
    %cst_32 = arith.constant 1.000000e+00 : f32
    %116 = vector.broadcast %cst_32 : f32 to vector<32x64xf32>
    %117 = arith.subf %116, %115 : vector<32x64xf32>
    %cst_33 = arith.constant 5.000000e-01 : f32
    %118 = vector.broadcast %cst_33 : f32 to vector<32x64xf32>
    %119 = arith.mulf %118, %87 : vector<32x64xf32>
    %cst_34 = arith.constant 5.000000e-01 : f32
    %120 = vector.broadcast %cst_34 : f32 to vector<32x64xf32>
    %121 = arith.mulf %120, %88 : vector<32x64xf32>
    %122 = arith.mulf %121, %117 : vector<32x64xf32>
    %123 = arith.addf %119, %122 : vector<32x64xf32>
    %c0_35 = arith.constant 0 : index
    %c0_36 = arith.constant 0 : index
    %124 = vector.load %arg5[%c0_35, %c0_36] : memref<64x32xf32, #tpu.memory_space<vmem>>, vector<64x32xf32>
    %cst_37 = arith.constant dense<0.000000e+00> : vector<32x32xf32>
    %125 = tpu.matmul %123, %124, %cst_37 {dimension_numbers = #tpu.dot_dimension_numbers<[1], [0], [0], [1], [0, 0, 1, 1], [], []>} : vector<32x64xf32>, vector<64x32xf32>, vector<32x32xf32> -> vector<32x32xf32>
    %126 = vector.broadcast %5 : vector<1x32xf32> to vector<32x32xf32>
    %127 = arith.addf %125, %126 : vector<32x32xf32>
    %128 = arith.addf %83, %127 : vector<32x32xf32>
    %cst_38 = arith.constant dense<0.000000e+00> : vector<32xf32>
    %129 = vector.multi_reduction <add>, %128, %cst_38 [0] : vector<32x32xf32> to vector<32xf32>
    %130 = vector.shape_cast %129 : vector<32xf32> to vector<1x32xf32>
    %cst_39 = arith.constant 3.200000e+01 : f32
    %131 = vector.broadcast %cst_39 : f32 to vector<1x32xf32>
    %132 = arith.divf %130, %131 : vector<1x32xf32>
    %133 = vector.broadcast %132 : vector<1x32xf32> to vector<32x32xf32>
    %134 = arith.subf %128, %133 : vector<32x32xf32>
    %135 = arith.mulf %134, %134 : vector<32x32xf32>
    %cst_40 = arith.constant dense<0.000000e+00> : vector<32xf32>
    %136 = vector.multi_reduction <add>, %135, %cst_40 [0] : vector<32x32xf32> to vector<32xf32>
    %137 = vector.shape_cast %136 : vector<32xf32> to vector<1x32xf32>
    %cst_41 = arith.constant 3.200000e+01 : f32
    %138 = vector.broadcast %cst_41 : f32 to vector<1x32xf32>
    %139 = arith.divf %137, %138 : vector<1x32xf32>
    %cst_42 = arith.constant 9.99999974E-6 : f32
    %140 = vector.broadcast %cst_42 : f32 to vector<1x32xf32>
    %141 = arith.addf %139, %140 : vector<1x32xf32>
    %142 = math.rsqrt %141 : vector<1x32xf32>
    %143 = vector.broadcast %142 : vector<1x32xf32> to vector<32x32xf32>
    %144 = arith.mulf %134, %143 : vector<32x32xf32>
    %145 = vector.broadcast %8 : vector<1x32xf32> to vector<32x32xf32>
    %146 = arith.mulf %144, %145 : vector<32x32xf32>
    %147 = vector.broadcast %9 : vector<1x32xf32> to vector<32x32xf32>
    %148 = arith.addf %146, %147 : vector<32x32xf32>
    %c0_43 = arith.constant 0 : index
    %c0_44 = arith.constant 0 : index
    %149 = vector.load %arg7[%c0_43, %c0_44] : memref<32x32xf32, #tpu.memory_space<vmem>>, vector<32x32xf32>
    tpu.vector_store %arg7[%c0_43, %c0_44], %148 {strides = array<i32>} : memref<32x32xf32, #tpu.memory_space<vmem>>, vector<32x32xf32>,
    return
  }
}

</mosaic_0001>

<llo_original>
// kernel: tst_encoder_layer.1
$region0: #{tst_encoder_layer.1}
  #allocation0 [shape = 'u32[]', space=smem, size = 0x4, offset = 0x4, fixed_abs, tag = 'smem constant byte address 0x4 - core index']
  #allocation1 [shape = 'u32[144,128]{1,0:T(1,128)}', space=vmem, size = 0x12000, scoped, tag = 'internal scratch']
  %s0 = inlined_call_operand.vmem [shape: f32[32,32], index: 0, kind: input, shape index: {}]
  %s1 = inlined_call_operand.vmem [shape: f32[32,96], index: 1, kind: input, shape index: {}]
  %s2 = inlined_call_operand.vmem [shape: f32[128,32], index: 2, kind: input, shape index: {}]
  %s3 = inlined_call_operand.vmem [shape: f32[32,32], index: 3, kind: input, shape index: {}]
  %s4 = inlined_call_operand.vmem [shape: f32[32,64], index: 4, kind: input, shape index: {}]
  %s5 = inlined_call_operand.vmem [shape: f32[64,32], index: 5, kind: input, shape index: {}]
  %s6 = inlined_call_operand.vmem [shape: f32[16,128], index: 6, kind: input, shape index: {}]
  %s7 = inlined_call_operand.hbm [shape: f32[32,32], index: 7, kind: output, shape index: {}]
  %s8 = sld [smem:[#allocation0]]
  $region38: #{tst_encoder_layer.1} parent=0
    _
  %s10 = ssub.s32 1, %s8
  %s11 = scalar_select 0, %s10, %s8
  $region1: #{tst_encoder_layer.1} parent=0
    #allocation2 [shape = 'u8[16384]{0}', space=vmem, size = 0x4000, scoped, tag = 'output window, operand 0, single buffered']
    #allocation3 [shape = 's32[1]{0}', space=sflag, size = 0x4, scoped, tag = 'scoped memory for tst_encoder_layer.1']
    %12 = vsyncpa [#allocation3], 0
    // Predicated region
    $region2: #{tst_encoder_layer.1} parent=1 // pred_check
      _
    $region3: #{tst_encoder_layer.1} parent=1 // pred_check_branch
      %14 = sbr.rel (0) target = $region5
    $region4: #{tst_encoder_layer.1} parent=1 // pred_region
      _
    $region5: #{tst_encoder_layer.1} parent=1 // pred_fallthru
      _
    // Predicated region
    $region6: #{tst_encoder_layer.1} parent=1 // pred_check
      _
    $region7: #{tst_encoder_layer.1} parent=1 // pred_check_branch
      %16 = sbr.rel (0) target = $region9
    $region8: #{tst_encoder_layer.1} parent=1 // pred_region
      _
    $region9: #{tst_encoder_layer.1} parent=1 // pred_fallthru
      _
    // Predicated region
    $region10: #{tst_encoder_layer.1} parent=1 // pred_check
      _
    $region11: #{tst_encoder_layer.1} parent=1 // pred_check_branch
      %18 = sbr.rel (0) target = $region13
    $region12: #{tst_encoder_layer.1} parent=1 // pred_region
      _
    $region13: #{tst_encoder_layer.1} parent=1 // pred_fallthru
      _
    // Predicated region
    $region14: #{tst_encoder_layer.1} parent=1 // pred_check
      _
    $region15: #{tst_encoder_layer.1} parent=1 // pred_check_branch
      %20 = sbr.rel (0) target = $region17
    $region16: #{tst_encoder_layer.1} parent=1 // pred_region
      _
    $region17: #{tst_encoder_layer.1} parent=1 // pred_fallthru
      _
    // Predicated region
    $region18: #{tst_encoder_layer.1} parent=1 // pred_check
      _
    $region19: #{tst_encoder_layer.1} parent=1 // pred_check_branch
      %22 = sbr.rel (0) target = $region21
    $region20: #{tst_encoder_layer.1} parent=1 // pred_region
      _
    $region21: #{tst_encoder_layer.1} parent=1 // pred_fallthru
      _
    // Predicated region
    $region22: #{tst_encoder_layer.1} parent=1 // pred_check
      _
    $region23: #{tst_encoder_layer.1} parent=1 // pred_check_branch
      %24 = sbr.rel (0) target = $region25
    $region24: #{tst_encoder_layer.1} parent=1 // pred_region
      _
    $region25: #{tst_encoder_layer.1} parent=1 // pred_fallthru
      _
    // Predicated region
    $region26: #{tst_encoder_layer.1} parent=1 // pred_check
      _
    $region27: #{tst_encoder_layer.1} parent=1 // pred_check_branch
      %26 = sbr.rel (0) target = $region29
    $region28: #{tst_encoder_layer.1} parent=1 // pred_region
      _
    $region29: #{tst_encoder_layer.1} parent=1 // pred_fallthru
      _
    %v27 = vld [vmem:[%s0] sm:$0xff]
    %v28 = vld [vmem:[%s0 + $0x8] sm:$0xff]
    %v29 = vld [vmem:[%s0 + $0x10] sm:$0xff]
    %v30 = vld [vmem:[%s0 + $0x18] sm:$0xff]
    %v31 = vld [vmem:[%s6] sm:$0xff]
    %v32 = vld [vmem:[%s6 + $0x8] sm:$0xff]
    %v33 = vld [vmem:[%s1] sm:$0xff]
    %v34 = vld [vmem:[%s1 + $0x8] sm:$0xff]
    %v35 = vld [vmem:[%s1 + $0x10] sm:$0xff]
    %v36 = vld [vmem:[%s1 + $0x18] sm:$0xff]
    %v37 = vlaneseq
    %v38 = vshrl.u32 %v37, 7
    %v39 = vsub.s32 0, %v38
    %v40 = vrot.slane %v31, %v39
    %vm41 = vcmask 261120
    %v43 = vsel %vm41, %v27, 0
    %v46 = vsel %vm41, %v28, 0
    %v49 = vsel %vm41, %v29, 0
    %v52 = vsel %vm41, %v30, 0
    %54 = vmatprep.subr.mxu0 0.0
    %55 = vmatpush1.msra.mxu0 %v33
    %56 = vmatprep.subr.mxu0 0.0
    %57 = vmatpush1.msra.mxu0 %v34
    %58 = vmatprep.subr.mxu0 0.0
    %59 = vmatpush1.msra.mxu0 %v35
    %60 = vmatprep.subr.mxu0 0.0
    %61 = vmatpush1.msra.mxu0 %v36
    %62 = vmatprep.subr.mxu0 0.0
    %63 = vmatpush1.msra.mxu0 0.0
    %64 = vmatprep.subr.mxu0 0.0
    %65 = vmatpush1.msra.mxu0 0.0
    %66 = vmatprep.subr.mxu0 0.0
    %67 = vmatpush1.msra.mxu0 0.0
    %68 = vmatprep.subr.mxu0 0.0
    %69 = vmatpush1.msra.mxu0 0.0
    %70 = vmatprep.subr.mxu0 0.0
    %71 = vmatpush1.msra.mxu0 0.0
    %72 = vmatprep.subr.mxu0 0.0
    %73 = vmatpush1.msra.mxu0 0.0
    %74 = vmatprep.subr.mxu0 0.0
    %75 = vmatpush1.msra.mxu0 0.0
    %76 = vmatprep.subr.mxu0 0.0
    %77 = vmatpush1.msra.mxu0 0.0
    %78 = vmatprep.subr.mxu0 0.0
    %79 = vmatpush1.msra.mxu0 0.0
    %80 = vmatprep.subr.mxu0 0.0
    %81 = vmatpush1.msra.mxu0 0.0
    %82 = vmatprep.subr.mxu0 0.0
    %83 = vmatpush1.msra.mxu0 0.0
    %84 = vmatprep.subr.mxu0 0.0
    %85 = vmatpush1.msra.mxu0 0.0
    %86 = vmatprep.subr.mxu0 0.0
    %87 = vmatpush1.msra.mxu0 0.0
    %88 = vmatprep.subr.mxu0 0.0
    %89 = vmatpush1.msra.mxu0 0.0
    %90 = vmatprep.subr.mxu0 0.0
    %91 = vmatpush1.msra.mxu0 0.0
    %92 = vmatprep.subr.mxu0 0.0
    %93 = vmatpush1.msra.mxu0 0.0
    %94 = vmatprep.subr.mxu0 0.0
    %95 = vmatpush1.msra.mxu0 0.0
    %96 = vmatprep.subr.mxu0 0.0
    %97 = vmatpush1.msra.mxu0 0.0
    %98 = vmatprep.subr.mxu0 0.0
    %99 = vmatpush1.msra.mxu0 0.0
    %100 = vmatprep.subr.mxu0 0.0
    %101 = vmatpush1.msra.mxu0 0.0
    %102 = vmatprep.subr.mxu0 0.0
    %103 = vmatpush1.msra.mxu0 0.0
    %104 = vmatprep.subr.mxu0 0.0
    %105 = vmatpush1.msra.mxu0 0.0
    %106 = vmatprep.subr.mxu0 0.0
    %107 = vmatpush1.msra.mxu0 0.0
    %108 = vmatprep.subr.mxu0 0.0
    %109 = vmatpush1.msra.mxu0 0.0
    %110 = vmatprep.subr.mxu0 0.0
    %111 = vmatpush1.msra.mxu0 0.0
    %112 = vmatprep.subr.mxu0 0.0
    %113 = vmatpush1.msra.mxu0 0.0
    %114 = vmatprep.subr.mxu0 0.0
    %115 = vmatpush1.msra.mxu0 0.0
    %116 = vmatprep.subr.mxu0 0.0
    %117 = vmatpush1.msra.mxu0 0.0
    %118 = vmatprep.mubr.f32.mxu0 0.0
    %119 = vmatmul.mubr.f32.gmra.mrb[0].mxu0 %v43
    %v120 = vpop.f32.mrb[0].mxu0
    %v121 = vadd.f32 %v40, %v120
    %v122 = vpop.f32.mrb[0].mxu0
    %123 = vmatprep.mubr.f32.mxu0 0.0
    %124 = vmatmul.mubr.f32.gmra.mrb[0].mxu0 %v46
    %v125 = vpop.f32.mrb[0].mxu0
    %v126 = vadd.f32 %v40, %v125
    %v127 = vpop.f32.mrb[0].mxu0
    %128 = vmatprep.mubr.f32.mxu0 0.0
    %129 = vmatmul.mubr.f32.gmra.mrb[0].mxu0 %v49
    %v130 = vpop.f32.mrb[0].mxu0
    %v131 = vadd.f32 %v40, %v130
    %v132 = vpop.f32.mrb[0].mxu0
    %133 = vmatprep.mubr.f32.mxu0 0.0
    %134 = vmatmul.mubr.f32.gmra.mrb[0].mxu0 %v52
    %v135 = vpop.f32.mrb[0].mxu0
    %v136 = vadd.f32 %v40, %v135
    %v137 = vpop.f32.mrb[0].mxu0
    %138 = vdwg.mxu0
    %v139 = vlaneseq
    %v140 = vshrl.u32 %v139, 7
    %v141 = vsub.s32 0, %v140
    %v142 = vrot.slane %v32, %v141
    %v143 = vmul.f32 %v121, %v142
    %v144 = vmul.f32 %v126, %v142
    %v145 = vmul.f32 %v131, %v142
    %v146 = vmul.f32 %v136, %v142
    %v147 = vlaneseq
    %v148 = vshrl.u32 %v147, 7
    %v149 = vsub.s32 1, %v148
    %v150 = vrot.slane %v32, %v149
    %v151 = vmul.f32 %v121, %v150
    %v152 = vmul.f32 %v126, %v150
    %v153 = vmul.f32 %v131, %v150
    %v154 = vmul.f32 %v136, %v150
    %v155 = vlaneseq
    %v156 = vshrl.u32 %v155, 7
    %v157 = vsub.s32 2, %v156
    %v158 = vrot.slane %v32, %v157
    %v159 = vmul.f32 %v121, %v158
    %v160 = vmul.f32 %v126, %v158
    %v161 = vmul.f32 %v131, %v158
    %v162 = vmul.f32 %v136, %v158
    %v163 = vlaneseq
    %v164 = vshrl.u32 %v163, 7
    %v165 = vsub.s32 3, %v164
    %v166 = vrot.slane %v32, %v165
    %v167 = vmul.f32 %v121, %v166
    %v168 = vmul.f32 %v126, %v166
    %v169 = vmul.f32 %v131, %v166
    %v170 = vmul.f32 %v136, %v166
    %v171 = vld [vmem:[%s2] sm:$0xff]
    %v172 = vld [vmem:[%s2 + $0x8] sm:$0xff]
    %v173 = vld [vmem:[%s2 + $0x10] sm:$0xff]
    %v174 = vld [vmem:[%s2 + $0x18] sm:$0xff]
    %v175 = vld [vmem:[%s2 + $0x20] sm:$0xff]
    %v176 = vld [vmem:[%s2 + $0x28] sm:$0xff]
    %v177 = vld [vmem:[%s2 + $0x30] sm:$0xff]
    %v178 = vld [vmem:[%s2 + $0x38] sm:$0xff]
    %v179 = vld [vmem:[%s2 + $0x40] sm:$0xff]
    %v180 = vld [vmem:[%s2 + $0x48] sm:$0xff]
    %v181 = vld [vmem:[%s2 + $0x50] sm:$0xff]
    %v182 = vld [vmem:[%s2 + $0x58] sm:$0xff]
    %v183 = vld [vmem:[%s2 + $0x60] sm:$0xff]
    %v184 = vld [vmem:[%s2 + $0x68] sm:$0xff]
    %v185 = vld [vmem:[%s2 + $0x70] sm:$0xff]
    %v186 = vld [vmem:[%s2 + $0x78] sm:$0xff]
    %191 = vrot.lane.b32.xlu0 %v121, 96
    %v192 = vpop.permute.xlu0 %191
    %193 = vrot.lane.b32.xlu0 %v126, 96
    %v194 = vpop.permute.xlu0 %193
    %195 = vrot.lane.b32.xlu0 %v131, 96
    %v196 = vpop.permute.xlu0 %195
    %197 = vrot.lane.b32.xlu0 %v136, 96
    %v198 = vpop.permute.xlu0 %197
    %v200 = vsel %vm41, %v143, 0
    %v203 = vsel %vm41, %v144, 0
    %v206 = vsel %vm41, %v145, 0
    %v209 = vsel %vm41, %v146, 0
    %v212 = vsel %vm41, %v151, 0
    %v215 = vsel %vm41, %v152, 0
    %v218 = vsel %vm41, %v153, 0
    %v221 = vsel %vm41, %v154, 0
    %v224 = vsel %vm41, %v159, 0
    %v227 = vsel %vm41, %v160, 0
    %v230 = vsel %vm41, %v161, 0
    %v233 = vsel %vm41, %v162, 0
    %v236 = vsel %vm41, %v167, 0
    %v239 = vsel %vm41, %v168, 0
    %v242 = vsel %vm41, %v169, 0
    %v245 = vsel %vm41, %v170, 0
    %v247 = vsel %vm41, %v192, 0
    %v249 = vsel %vm41, %v194, 0
    %v251 = vsel %vm41, %v196, 0
    %v253 = vsel %vm41, %v198, 0
    %255 = vmatprep.subr.mxu0 0.0
    %256 = vmatpush1.xpose.msra.mxu0 %v247
    %257 = vmatprep.subr.mxu0 0.0
    %258 = vmatpush1.xpose.msra.mxu0 %v249
    %259 = vmatprep.subr.mxu0 0.0
    %260 = vmatpush1.xpose.msra.mxu0 %v251
    %261 = vmatprep.subr.mxu0 0.0
    %262 = vmatpush1.xpose.msra.mxu0 %v253
    %263 = vmatprep.subr.mxu0 0.0
    %264 = vmatpush1.xpose.msra.mxu0 0.0
    %265 = vmatprep.subr.mxu0 0.0
    %266 = vmatpush1.xpose.msra.mxu0 0.0
    %267 = vmatprep.subr.mxu0 0.0
    %268 = vmatpush1.xpose.msra.mxu0 0.0
    %269 = vmatprep.subr.mxu0 0.0
    %270 = vmatpush1.xpose.msra.mxu0 0.0
    %271 = vmatprep.subr.mxu0 0.0
    %272 = vmatpush1.xpose.msra.mxu0 0.0
    %273 = vmatprep.subr.mxu0 0.0
    %274 = vmatpush1.xpose.msra.mxu0 0.0
    %275 = vmatprep.subr.mxu0 0.0
    %276 = vmatpush1.xpose.msra.mxu0 0.0
    %277 = vmatprep.subr.mxu0 0.0
    %278 = vmatpush1.xpose.msra.mxu0 0.0
    %279 = vmatprep.subr.mxu0 0.0
    %280 = vmatpush1.xpose.msra.mxu0 0.0
    %281 = vmatprep.subr.mxu0 0.0
    %282 = vmatpush1.xpose.msra.mxu0 0.0
    %283 = vmatprep.subr.mxu0 0.0
    %284 = vmatpush1.xpose.msra.mxu0 0.0
    %285 = vmatprep.subr.mxu0 0.0
    %286 = vmatpush1.xpose.msra.mxu0 0.0
    %287 = vmatprep.subr.mxu0 0.0
    %288 = vmatpush1.xpose.msra.mxu0 0.0
    %289 = vmatprep.subr.mxu0 0.0
    %290 = vmatpush1.xpose.msra.mxu0 0.0
    %291 = vmatprep.subr.mxu0 0.0
    %292 = vmatpush1.xpose.msra.mxu0 0.0
    %293 = vmatprep.subr.mxu0 0.0
    %294 = vmatpush1.xpose.msra.mxu0 0.0
    %295 = vmatprep.subr.mxu0 0.0
    %296 = vmatpush1.xpose.msra.mxu0 0.0
    %297 = vmatprep.subr.mxu0 0.0
    %298 = vmatpush1.xpose.msra.mxu0 0.0
    %299 = vmatprep.subr.mxu0 0.0
    %300 = vmatpush1.xpose.msra.mxu0 0.0
    %301 = vmatprep.subr.mxu0 0.0
    %302 = vmatpush1.xpose.msra.mxu0 0.0
    %303 = vmatprep.subr.mxu0 0.0
    %304 = vmatpush1.xpose.msra.mxu0 0.0
    %305 = vmatprep.subr.mxu0 0.0
    %306 = vmatpush1.xpose.msra.mxu0 0.0
    %307 = vmatprep.subr.mxu0 0.0
    %308 = vmatpush1.xpose.msra.mxu0 0.0
    %309 = vmatprep.subr.mxu0 0.0
    %310 = vmatpush1.xpose.msra.mxu0 0.0
    %311 = vmatprep.subr.mxu0 0.0
    %312 = vmatpush1.xpose.msra.mxu0 0.0
    %313 = vmatprep.subr.mxu0 0.0
    %314 = vmatpush1.xpose.msra.mxu0 0.0
    %315 = vmatprep.subr.mxu0 0.0
    %316 = vmatpush1.xpose.msra.mxu0 0.0
    %317 = vmatprep.subr.mxu0 0.0
    %318 = vmatpush1.xpose.msra.mxu0 0.0
    %319 = vmatprep.mubr.f32.mxu0 0.0
    %320 = vmatmul.mubr.f32.gmra.mrb[0].mxu0 %v200
    %v321 = vpop.f32.mrb[0].mxu0
    %v322 = vadd.f32 %v171, %v321
    %v323 = vpop.f32.mrb[0].mxu0
    %324 = vmatprep.mubr.f32.mxu0 0.0
    %325 = vmatmul.mubr.f32.gmra.mrb[0].mxu0 %v203
    %v326 = vpop.f32.mrb[0].mxu0
    %v327 = vadd.f32 %v172, %v326
    %v328 = vpop.f32.mrb[0].mxu0
    %329 = vmatprep.mubr.f32.mxu0 0.0
    %330 = vmatmul.mubr.f32.gmra.mrb[0].mxu0 %v206
    %v331 = vpop.f32.mrb[0].mxu0
    %v332 = vadd.f32 %v173, %v331
    %v333 = vpop.f32.mrb[0].mxu0
    %334 = vmatprep.mubr.f32.mxu0 0.0
    %335 = vmatmul.mubr.f32.gmra.mrb[0].mxu0 %v209
    %v336 = vpop.f32.mrb[0].mxu0
    %v337 = vadd.f32 %v174, %v336
    %v338 = vpop.f32.mrb[0].mxu0
    %339 = vmatprep.mubr.f32.mxu0 0.0
    %340 = vmatmul.mubr.f32.gmra.mrb[0].mxu0 %v212
    %v341 = vpop.f32.mrb[0].mxu0
    %v342 = vadd.f32 %v175, %v341
    %v343 = vpop.f32.mrb[0].mxu0
    %344 = vmatprep.mubr.f32.mxu0 0.0
    %345 = vmatmul.mubr.f32.gmra.mrb[0].mxu0 %v215
    %v346 = vpop.f32.mrb[0].mxu0
    %v347 = vadd.f32 %v176, %v346
    %v348 = vpop.f32.mrb[0].mxu0
    %349 = vmatprep.mubr.f32.mxu0 0.0
    %350 = vmatmul.mubr.f32.gmra.mrb[0].mxu0 %v218
    %v351 = vpop.f32.mrb[0].mxu0
    %v352 = vadd.f32 %v177, %v351
    %v353 = vpop.f32.mrb[0].mxu0
    %354 = vmatprep.mubr.f32.mxu0 0.0
    %355 = vmatmul.mubr.f32.gmra.mrb[0].mxu0 %v221
    %v356 = vpop.f32.mrb[0].mxu0
    %v357 = vadd.f32 %v178, %v356
    %v358 = vpop.f32.mrb[0].mxu0
    %359 = vmatprep.mubr.f32.mxu0 0.0
    %360 = vmatmul.mubr.f32.gmra.mrb[0].mxu0 %v224
    %v361 = vpop.f32.mrb[0].mxu0
    %v362 = vadd.f32 %v179, %v361
    %v363 = vpop.f32.mrb[0].mxu0
    %364 = vmatprep.mubr.f32.mxu0 0.0
    %365 = vmatmul.mubr.f32.gmra.mrb[0].mxu0 %v227
    %v366 = vpop.f32.mrb[0].mxu0
    %v367 = vadd.f32 %v180, %v366
    %v368 = vpop.f32.mrb[0].mxu0
    %369 = vmatprep.mubr.f32.mxu0 0.0
    %370 = vmatmul.mubr.f32.gmra.mrb[0].mxu0 %v230
    %v371 = vpop.f32.mrb[0].mxu0
    %v372 = vadd.f32 %v181, %v371
    %v373 = vpop.f32.mrb[0].mxu0
    %374 = vmatprep.mubr.f32.mxu0 0.0
    %375 = vmatmul.mubr.f32.gmra.mrb[0].mxu0 %v233
    %v376 = vpop.f32.mrb[0].mxu0
    %v377 = vadd.f32 %v182, %v376
    %v378 = vpop.f32.mrb[0].mxu0
    %379 = vmatprep.mubr.f32.mxu0 0.0
    %380 = vmatmul.mubr.f32.gmra.mrb[0].mxu0 %v236
    %v381 = vpop.f32.mrb[0].mxu0
    %v382 = vadd.f32 %v183, %v381
    %v383 = vpop.f32.mrb[0].mxu0
    %384 = vmatprep.mubr.f32.mxu0 0.0
    %385 = vmatmul.mubr.f32.gmra.mrb[0].mxu0 %v239
    %v386 = vpop.f32.mrb[0].mxu0
    %v387 = vadd.f32 %v184, %v386
    %v388 = vpop.f32.mrb[0].mxu0
    %389 = vmatprep.mubr.f32.mxu0 0.0
    %390 = vmatmul.mubr.f32.gmra.mrb[0].mxu0 %v242
    %v391 = vpop.f32.mrb[0].mxu0
    %v392 = vadd.f32 %v185, %v391
    %v393 = vpop.f32.mrb[0].mxu0
    %394 = vmatprep.mubr.f32.mxu0 0.0
    %395 = vmatmul.mubr.f32.gmra.mrb[0].mxu0 %v245
    %v396 = vpop.f32.mrb[0].mxu0
    %v397 = vadd.f32 %v186, %v396
    %v398 = vpop.f32.mrb[0].mxu0
    %399 = vdwg.mxu0
    %v400 = vsel %vm41, %v322, -inf
    %401 = vmax.xlane.f32.xlu0 %v400
    %v402 = vpop.xlane.xlu0 %401
    %v403 = vsel %vm41, %v327, -inf
    %404 = vmax.xlane.f32.xlu0 %v403
    %v405 = vpop.xlane.xlu0 %404
    %v406 = vsel %vm41, %v332, -inf
    %407 = vmax.xlane.f32.xlu0 %v406
    %v408 = vpop.xlane.xlu0 %407
    %v409 = vsel %vm41, %v337, -inf
    %410 = vmax.xlane.f32.xlu0 %v409
    %v411 = vpop.xlane.xlu0 %410
    %v412 = vsel %vm41, %v342, -inf
    %413 = vmax.xlane.f32.xlu0 %v412
    %v414 = vpop.xlane.xlu0 %413
    %v415 = vsel %vm41, %v347, -inf
    %416 = vmax.xlane.f32.xlu0 %v415
    %v417 = vpop.xlane.xlu0 %416
    %v418 = vsel %vm41, %v352, -inf
    %419 = vmax.xlane.f32.xlu0 %v418
    %v420 = vpop.xlane.xlu0 %419
    %v421 = vsel %vm41, %v357, -inf
    %422 = vmax.xlane.f32.xlu0 %v421
    %v423 = vpop.xlane.xlu0 %422
    %v424 = vsel %vm41, %v362, -inf
    %425 = vmax.xlane.f32.xlu0 %v424
    %v426 = vpop.xlane.xlu0 %425
    %v427 = vsel %vm41, %v367, -inf
    %428 = vmax.xlane.f32.xlu0 %v427
    %v429 = vpop.xlane.xlu0 %428
    %v430 = vsel %vm41, %v372, -inf
    %431 = vmax.xlane.f32.xlu0 %v430
    %v432 = vpop.xlane.xlu0 %431
    %v433 = vsel %vm41, %v377, -inf
    %434 = vmax.xlane.f32.xlu0 %v433
    %v435 = vpop.xlane.xlu0 %434
    %v436 = vsel %vm41, %v382, -inf
    %437 = vmax.xlane.f32.xlu0 %v436
    %v438 = vpop.xlane.xlu0 %437
    %v439 = vsel %vm41, %v387, -inf
    %440 = vmax.xlane.f32.xlu0 %v439
    %v441 = vpop.xlane.xlu0 %440
    %v442 = vsel %vm41, %v392, -inf
    %443 = vmax.xlane.f32.xlu0 %v442
    %v444 = vpop.xlane.xlu0 %443
    %v445 = vsel %vm41, %v397, -inf
    %446 = vmax.xlane.f32.xlu0 %v445
    %v447 = vpop.xlane.xlu0 %446
    %v448 = vsub.f32 %v322, %v402
    %v449 = vsub.f32 %v327, %v405
    %v450 = vsub.f32 %v332, %v408
    %v451 = vsub.f32 %v337, %v411
    %v452 = vsub.f32 %v342, %v414
    %v453 = vsub.f32 %v347, %v417
    %v454 = vsub.f32 %v352, %v420
    %v455 = vsub.f32 %v357, %v423
    %v456 = vsub.f32 %v362, %v426
    %v457 = vsub.f32 %v367, %v429
    %v458 = vsub.f32 %v372, %v432
    %v459 = vsub.f32 %v377, %v435
    %v460 = vsub.f32 %v382, %v438
    %v461 = vsub.f32 %v387, %v441
    %v462 = vsub.f32 %v392, %v444
    %v463 = vsub.f32 %v397, %v447
    %v464 = vmul.f32 %v448, 1.442695
    %v465 = vpow.pop %v464
    %v466 = vmul.f32 %v449, 1.442695
    %v467 = vpow.pop %v466
    %v468 = vmul.f32 %v450, 1.442695
    %v469 = vpow.pop %v468
    %v470 = vmul.f32 %v451, 1.442695
    %v471 = vpow.pop %v470
    %v472 = vmul.f32 %v452, 1.442695
    %v473 = vpow.pop %v472
    %v474 = vmul.f32 %v453, 1.442695
    %v475 = vpow.pop %v474
    %v476 = vmul.f32 %v454, 1.442695
    %v477 = vpow.pop %v476
    %v478 = vmul.f32 %v455, 1.442695
    %v479 = vpow.pop %v478
    %v480 = vmul.f32 %v456, 1.442695
    %v481 = vpow.pop %v480
    %v482 = vmul.f32 %v457, 1.442695
    %v483 = vpow.pop %v482
    %v484 = vmul.f32 %v458, 1.442695
    %v485 = vpow.pop %v484
    %v486 = vmul.f32 %v459, 1.442695
    %v487 = vpow.pop %v486
    %v488 = vmul.f32 %v460, 1.442695
    %v489 = vpow.pop %v488
    %v490 = vmul.f32 %v461, 1.442695
    %v491 = vpow.pop %v490
    %v492 = vmul.f32 %v462, 1.442695
    %v493 = vpow.pop %v492
    %v494 = vmul.f32 %v463, 1.442695
    %v495 = vpow.pop %v494
    %v496 = vsel %vm41, %v465, 0.0
    %497 = vadd.xlane.f32.xlu0 %v496
    %v498 = vpop.xlane.xlu0 %497
    %v499 = vsel %vm41, %v467, 0.0
    %500 = vadd.xlane.f32.xlu0 %v499
    %v501 = vpop.xlane.xlu0 %500
    %v502 = vsel %vm41, %v469, 0.0
    %503 = vadd.xlane.f32.xlu0 %v502
    %v504 = vpop.xlane.xlu0 %503
    %v505 = vsel %vm41, %v471, 0.0
    %506 = vadd.xlane.f32.xlu0 %v505
    %v507 = vpop.xlane.xlu0 %506
    %v508 = vsel %vm41, %v473, 0.0
    %509 = vadd.xlane.f32.xlu0 %v508
    %v510 = vpop.xlane.xlu0 %509
    %v511 = vsel %vm41, %v475, 0.0
    %512 = vadd.xlane.f32.xlu0 %v511
    %v513 = vpop.xlane.xlu0 %512
    %v514 = vsel %vm41, %v477, 0.0
    %515 = vadd.xlane.f32.xlu0 %v514
    %v516 = vpop.xlane.xlu0 %515
    %v517 = vsel %vm41, %v479, 0.0
    %518 = vadd.xlane.f32.xlu0 %v517
    %v519 = vpop.xlane.xlu0 %518
    %v520 = vsel %vm41, %v481, 0.0
    %521 = vadd.xlane.f32.xlu0 %v520
    %v522 = vpop.xlane.xlu0 %521
    %v523 = vsel %vm41, %v483, 0.0
    %524 = vadd.xlane.f32.xlu0 %v523
    %v525 = vpop.xlane.xlu0 %524
    %v526 = vsel %vm41, %v485, 0.0
    %527 = vadd.xlane.f32.xlu0 %v526
    %v528 = vpop.xlane.xlu0 %527
    %v529 = vsel %vm41, %v487, 0.0
    %530 = vadd.xlane.f32.xlu0 %v529
    %v531 = vpop.xlane.xlu0 %530
    %v532 = vsel %vm41, %v489, 0.0
    %533 = vadd.xlane.f32.xlu0 %v532
    %v534 = vpop.xlane.xlu0 %533
    %v535 = vsel %vm41, %v491, 0.0
    %536 = vadd.xlane.f32.xlu0 %v535
    %v537 = vpop.xlane.xlu0 %536
    %v538 = vsel %vm41, %v493, 0.0
    %539 = vadd.xlane.f32.xlu0 %v538
    %v540 = vpop.xlane.xlu0 %539
    %v541 = vsel %vm41, %v495, 0.0
    %542 = vadd.xlane.f32.xlu0 %v541
    %v543 = vpop.xlane.xlu0 %542
    %v544 = vrcp.pop %v498
    %v545 = vrcp.pop %v501
    %v546 = vrcp.pop %v504
    %v547 = vrcp.pop %v507
    %v548 = vrcp.pop %v510
    %v549 = vrcp.pop %v513
    %v550 = vrcp.pop %v516
    %v551 = vrcp.pop %v519
    %v552 = vrcp.pop %v522
    %v553 = vrcp.pop %v525
    %v554 = vrcp.pop %v528
    %v555 = vrcp.pop %v531
    %v556 = vrcp.pop %v534
    %v557 = vrcp.pop %v537
    %v558 = vrcp.pop %v540
    %v559 = vrcp.pop %v543
    %v560 = vmul.f32 %v465, %v544
    %v561 = vmul.f32 %v467, %v545
    %v562 = vmul.f32 %v469, %v546
    %v563 = vmul.f32 %v471, %v547
    %v564 = vmul.f32 %v473, %v548
    %v565 = vmul.f32 %v475, %v549
    %v566 = vmul.f32 %v477, %v550
    %v567 = vmul.f32 %v479, %v551
    %v568 = vmul.f32 %v481, %v552
    %v569 = vmul.f32 %v483, %v553
    %v570 = vmul.f32 %v485, %v554
    %v571 = vmul.f32 %v487, %v555
    %v572 = vmul.f32 %v489, %v556
    %v573 = vmul.f32 %v491, %v557
    %v574 = vmul.f32 %v493, %v558
    %v575 = vmul.f32 %v495, %v559
    %576 = vrot.lane.b32.xlu0 %v121, 64
    %v577 = vpop.permute.xlu0 %576
    %578 = vrot.lane.b32.xlu0 %v126, 64
    %v579 = vpop.permute.xlu0 %578
    %580 = vrot.lane.b32.xlu0 %v131, 64
    %v581 = vpop.permute.xlu0 %580
    %582 = vrot.lane.b32.xlu0 %v136, 64
    %v583 = vpop.permute.xlu0 %582
    %v589 = vsel %vm41, %v560, 0
    %v592 = vsel %vm41, %v561, 0
    %v595 = vsel %vm41, %v562, 0
    %v598 = vsel %vm41, %v563, 0
    %v601 = vsel %vm41, %v564, 0
    %v604 = vsel %vm41, %v565, 0
    %v607 = vsel %vm41, %v566, 0
    %v610 = vsel %vm41, %v567, 0
    %v613 = vsel %vm41, %v568, 0
    %v616 = vsel %vm41, %v569, 0
    %v619 = vsel %vm41, %v570, 0
    %v622 = vsel %vm41, %v571, 0
    %v625 = vsel %vm41, %v572, 0
    %v628 = vsel %vm41, %v573, 0
    %v631 = vsel %vm41, %v574, 0
    %v634 = vsel %vm41, %v575, 0
    %636 = vmatprep.subr.mxu0 0.0
    %637 = vmatpush1.msra.mxu0 %v577
    %638 = vmatprep.subr.mxu0 0.0
    %639 = vmatpush1.msra.mxu0 %v579
    %640 = vmatprep.subr.mxu0 0.0
    %641 = vmatpush1.msra.mxu0 %v581
    %642 = vmatprep.subr.mxu0 0.0
    %643 = vmatpush1.msra.mxu0 %v583
    %644 = vmatprep.subr.mxu0 0.0
    %645 = vmatpush1.msra.mxu0 0.0
    %646 = vmatprep.subr.mxu0 0.0
    %647 = vmatpush1.msra.mxu0 0.0
    %648 = vmatprep.subr.mxu0 0.0
    %649 = vmatpush1.msra.mxu0 0.0
    %650 = vmatprep.subr.mxu0 0.0
    %651 = vmatpush1.msra.mxu0 0.0
    %652 = vmatprep.subr.mxu0 0.0
    %653 = vmatpush1.msra.mxu0 0.0
    %654 = vmatprep.subr.mxu0 0.0
    %655 = vmatpush1.msra.mxu0 0.0
    %656 = vmatprep.subr.mxu0 0.0
    %657 = vmatpush1.msra.mxu0 0.0
    %658 = vmatprep.subr.mxu0 0.0
    %659 = vmatpush1.msra.mxu0 0.0
    %660 = vmatprep.subr.mxu0 0.0
    %661 = vmatpush1.msra.mxu0 0.0
    %662 = vmatprep.subr.mxu0 0.0
    %663 = vmatpush1.msra.mxu0 0.0
    %664 = vmatprep.subr.mxu0 0.0
    %665 = vmatpush1.msra.mxu0 0.0
    %666 = vmatprep.subr.mxu0 0.0
    %667 = vmatpush1.msra.mxu0 0.0
    %668 = vmatprep.subr.mxu0 0.0
    %669 = vmatpush1.msra.mxu0 0.0
    %670 = vmatprep.subr.mxu0 0.0
    %671 = vmatpush1.msra.mxu0 0.0
    %672 = vmatprep.subr.mxu0 0.0
    %673 = vmatpush1.msra.mxu0 0.0
    %674 = vmatprep.subr.mxu0 0.0
    %675 = vmatpush1.msra.mxu0 0.0
    %676 = vmatprep.subr.mxu0 0.0
    %677 = vmatpush1.msra.mxu0 0.0
    %678 = vmatprep.subr.mxu0 0.0
    %679 = vmatpush1.msra.mxu0 0.0
    %680 = vmatprep.subr.mxu0 0.0
    %681 = vmatpush1.msra.mxu0 0.0
    %682 = vmatprep.subr.mxu0 0.0
    %683 = vmatpush1.msra.mxu0 0.0
    %684 = vmatprep.subr.mxu0 0.0
    %685 = vmatpush1.msra.mxu0 0.0
    %686 = vmatprep.subr.mxu0 0.0
    %687 = vmatpush1.msra.mxu0 0.0
    %688 = vmatprep.subr.mxu0 0.0
    %689 = vmatpush1.msra.mxu0 0.0
    %690 = vmatprep.subr.mxu0 0.0
    %691 = vmatpush1.msra.mxu0 0.0
    %692 = vmatprep.subr.mxu0 0.0
    %693 = vmatpush1.msra.mxu0 0.0
    %694 = vmatprep.subr.mxu0 0.0
    %695 = vmatpush1.msra.mxu0 0.0
    %696 = vmatprep.subr.mxu0 0.0
    %697 = vmatpush1.msra.mxu0 0.0
    %698 = vmatprep.subr.mxu0 0.0
    %699 = vmatpush1.msra.mxu0 0.0
    %700 = vmatprep.mubr.f32.mxu0 0.0
    %701 = vmatmul.mubr.f32.gmra.mrb[0].mxu0 %v589
    %v702 = vpop.f32.mrb[0].mxu0
    %v703 = vadd.f32 0.0, %v702
    %v704 = vpop.f32.mrb[0].mxu0
    %705 = vmatprep.mubr.f32.mxu0 0.0
    %706 = vmatmul.mubr.f32.gmra.mrb[0].mxu0 %v592
    %v707 = vpop.f32.mrb[0].mxu0
    %v708 = vadd.f32 0.0, %v707
    %v709 = vpop.f32.mrb[0].mxu0
    %710 = vmatprep.mubr.f32.mxu0 0.0
    %711 = vmatmul.mubr.f32.gmra.mrb[0].mxu0 %v595
    %v712 = vpop.f32.mrb[0].mxu0
    %v713 = vadd.f32 0.0, %v712
    %v714 = vpop.f32.mrb[0].mxu0
    %715 = vmatprep.mubr.f32.mxu0 0.0
    %716 = vmatmul.mubr.f32.gmra.mrb[0].mxu0 %v598
    %v717 = vpop.f32.mrb[0].mxu0
    %v718 = vadd.f32 0.0, %v717
    %v719 = vpop.f32.mrb[0].mxu0
    %720 = vmatprep.mubr.f32.mxu0 0.0
    %721 = vmatmul.mubr.f32.gmra.mrb[0].mxu0 %v601
    %v722 = vpop.f32.mrb[0].mxu0
    %v723 = vadd.f32 0.0, %v722
    %v724 = vpop.f32.mrb[0].mxu0
    %725 = vmatprep.mubr.f32.mxu0 0.0
    %726 = vmatmul.mubr.f32.gmra.mrb[0].mxu0 %v604
    %v727 = vpop.f32.mrb[0].mxu0
    %v728 = vadd.f32 0.0, %v727
    %v729 = vpop.f32.mrb[0].mxu0
    %730 = vmatprep.mubr.f32.mxu0 0.0
    %731 = vmatmul.mubr.f32.gmra.mrb[0].mxu0 %v607
    %v732 = vpop.f32.mrb[0].mxu0
    %v733 = vadd.f32 0.0, %v732
    %v734 = vpop.f32.mrb[0].mxu0
    %735 = vmatprep.mubr.f32.mxu0 0.0
    %736 = vmatmul.mubr.f32.gmra.mrb[0].mxu0 %v610
    %v737 = vpop.f32.mrb[0].mxu0
    %v738 = vadd.f32 0.0, %v737
    %v739 = vpop.f32.mrb[0].mxu0
    %740 = vmatprep.mubr.f32.mxu0 0.0
    %741 = vmatmul.mubr.f32.gmra.mrb[0].mxu0 %v613
    %v742 = vpop.f32.mrb[0].mxu0
    %v743 = vadd.f32 0.0, %v742
    %v744 = vpop.f32.mrb[0].mxu0
    %745 = vmatprep.mubr.f32.mxu0 0.0
    %746 = vmatmul.mubr.f32.gmra.mrb[0].mxu0 %v616
    %v747 = vpop.f32.mrb[0].mxu0
    %v748 = vadd.f32 0.0, %v747
    %v749 = vpop.f32.mrb[0].mxu0
    %750 = vmatprep.mubr.f32.mxu0 0.0
    %751 = vmatmul.mubr.f32.gmra.mrb[0].mxu0 %v619
    %v752 = vpop.f32.mrb[0].mxu0
    %v753 = vadd.f32 0.0, %v752
    %v754 = vpop.f32.mrb[0].mxu0
    %755 = vmatprep.mubr.f32.mxu0 0.0
    %756 = vmatmul.mubr.f32.gmra.mrb[0].mxu0 %v622
    %v757 = vpop.f32.mrb[0].mxu0
    %v758 = vadd.f32 0.0, %v757
    %v759 = vpop.f32.mrb[0].mxu0
    %760 = vmatprep.mubr.f32.mxu0 0.0
    %761 = vmatmul.mubr.f32.gmra.mrb[0].mxu0 %v625
    %v762 = vpop.f32.mrb[0].mxu0
    %v763 = vadd.f32 0.0, %v762
    %v764 = vpop.f32.mrb[0].mxu0
    %765 = vmatprep.mubr.f32.mxu0 0.0
    %766 = vmatmul.mubr.f32.gmra.mrb[0].mxu0 %v628
    %v767 = vpop.f32.mrb[0].mxu0
    %v768 = vadd.f32 0.0, %v767
    %v769 = vpop.f32.mrb[0].mxu0
    %770 = vmatprep.mubr.f32.mxu0 0.0
    %771 = vmatmul.mubr.f32.gmra.mrb[0].mxu0 %v631
    %v772 = vpop.f32.mrb[0].mxu0
    %v773 = vadd.f32 0.0, %v772
    %v774 = vpop.f32.mrb[0].mxu0
    %775 = vmatprep.mubr.f32.mxu0 0.0
    %776 = vmatmul.mubr.f32.gmra.mrb[0].mxu0 %v634
    %v777 = vpop.f32.mrb[0].mxu0
    %v778 = vadd.f32 0.0, %v777
    %v779 = vpop.f32.mrb[0].mxu0
    %780 = vdwg.mxu0
    %v781 = vmul.f32 %v703, %v142
    %v782 = vmul.f32 %v708, %v142
    %v783 = vmul.f32 %v713, %v142
    %v784 = vmul.f32 %v718, %v142
    %v785 = vmul.f32 %v723, %v150
    %v786 = vmul.f32 %v728, %v150
    %v787 = vmul.f32 %v733, %v150
    %v788 = vmul.f32 %v738, %v150
    %v789 = vadd.f32 %v781, %v785
    %v790 = vadd.f32 %v782, %v786
    %v791 = vadd.f32 %v783, %v787
    %v792 = vadd.f32 %v784, %v788
    %v793 = vmul.f32 %v743, %v158
    %v794 = vmul.f32 %v748, %v158
    %v795 = vmul.f32 %v753, %v158
    %v796 = vmul.f32 %v758, %v158
    %v797 = vadd.f32 %v789, %v793
    %v798 = vadd.f32 %v790, %v794
    %v799 = vadd.f32 %v791, %v795
    %v800 = vadd.f32 %v792, %v796
    %v801 = vmul.f32 %v763, %v166
    %v802 = vmul.f32 %v768, %v166
    %v803 = vmul.f32 %v773, %v166
    %v804 = vmul.f32 %v778, %v166
    %v805 = vadd.f32 %v797, %v801
    %v806 = vadd.f32 %v798, %v802
    %v807 = vadd.f32 %v799, %v803
    %v808 = vadd.f32 %v800, %v804
    %v809 = vld [vmem:[%s3] sm:$0xff]
    %v810 = vld [vmem:[%s3 + $0x8] sm:$0xff]
    %v811 = vld [vmem:[%s3 + $0x10] sm:$0xff]
    %v812 = vld [vmem:[%s3 + $0x18] sm:$0xff]
    %v813 = vlaneseq
    %v814 = vshrl.u32 %v813, 7
    %v815 = vsub.s32 1, %v814
    %v816 = vrot.slane %v31, %v815
    %v818 = vsel %vm41, %v805, 0
    %v821 = vsel %vm41, %v806, 0
    %v824 = vsel %vm41, %v807, 0
    %v827 = vsel %vm41, %v808, 0
    %829 = vmatprep.subr.mxu0 0.0
    %830 = vmatpush1.msra.mxu0 %v809
    %831 = vmatprep.subr.mxu0 0.0
    %832 = vmatpush1.msra.mxu0 %v810
    %833 = vmatprep.subr.mxu0 0.0
    %834 = vmatpush1.msra.mxu0 %v811
    %835 = vmatprep.subr.mxu0 0.0
    %836 = vmatpush1.msra.mxu0 %v812
    %837 = vmatprep.subr.mxu0 0.0
    %838 = vmatpush1.msra.mxu0 0.0
    %839 = vmatprep.subr.mxu0 0.0
    %840 = vmatpush1.msra.mxu0 0.0
    %841 = vmatprep.subr.mxu0 0.0
    %842 = vmatpush1.msra.mxu0 0.0
    %843 = vmatprep.subr.mxu0 0.0
    %844 = vmatpush1.msra.mxu0 0.0
    %845 = vmatprep.subr.mxu0 0.0
    %846 = vmatpush1.msra.mxu0 0.0
    %847 = vmatprep.subr.mxu0 0.0
    %848 = vmatpush1.msra.mxu0 0.0
    %849 = vmatprep.subr.mxu0 0.0
    %850 = vmatpush1.msra.mxu0 0.0
    %851 = vmatprep.subr.mxu0 0.0
    %852 = vmatpush1.msra.mxu0 0.0
    %853 = vmatprep.subr.mxu0 0.0
    %854 = vmatpush1.msra.mxu0 0.0
    %855 = vmatprep.subr.mxu0 0.0
    %856 = vmatpush1.msra.mxu0 0.0
    %857 = vmatprep.subr.mxu0 0.0
    %858 = vmatpush1.msra.mxu0 0.0
    %859 = vmatprep.subr.mxu0 0.0
    %860 = vmatpush1.msra.mxu0 0.0
    %861 = vmatprep.subr.mxu0 0.0
    %862 = vmatpush1.msra.mxu0 0.0
    %863 = vmatprep.subr.mxu0 0.0
    %864 = vmatpush1.msra.mxu0 0.0
    %865 = vmatprep.subr.mxu0 0.0
    %866 = vmatpush1.msra.mxu0 0.0
    %867 = vmatprep.subr.mxu0 0.0
    %868 = vmatpush1.msra.mxu0 0.0
    %869 = vmatprep.subr.mxu0 0.0
    %870 = vmatpush1.msra.mxu0 0.0
    %871 = vmatprep.subr.mxu0 0.0
    %872 = vmatpush1.msra.mxu0 0.0
    %873 = vmatprep.subr.mxu0 0.0
    %874 = vmatpush1.msra.mxu0 0.0
    %875 = vmatprep.subr.mxu0 0.0
    %876 = vmatpush1.msra.mxu0 0.0
    %877 = vmatprep.subr.mxu0 0.0
    %878 = vmatpush1.msra.mxu0 0.0
    %879 = vmatprep.subr.mxu0 0.0
    %880 = vmatpush1.msra.mxu0 0.0
    %881 = vmatprep.subr.mxu0 0.0
    %882 = vmatpush1.msra.mxu0 0.0
    %883 = vmatprep.subr.mxu0 0.0
    %884 = vmatpush1.msra.mxu0 0.0
    %885 = vmatprep.subr.mxu0 0.0
    %886 = vmatpush1.msra.mxu0 0.0
    %887 = vmatprep.subr.mxu0 0.0
    %888 = vmatpush1.msra.mxu0 0.0
    %889 = vmatprep.subr.mxu0 0.0
    %890 = vmatpush1.msra.mxu0 0.0
    %891 = vmatprep.subr.mxu0 0.0
    %892 = vmatpush1.msra.mxu0 0.0
    %893 = vmatprep.mubr.f32.mxu0 0.0
    %894 = vmatmul.mubr.f32.gmra.mrb[0].mxu0 %v818
    %v895 = vpop.f32.mrb[0].mxu0
    %v896 = vadd.f32 %v816, %v895
    %v897 = vpop.f32.mrb[0].mxu0
    %898 = vmatprep.mubr.f32.mxu0 0.0
    %899 = vmatmul.mubr.f32.gmra.mrb[0].mxu0 %v821
    %v900 = vpop.f32.mrb[0].mxu0
    %v901 = vadd.f32 %v816, %v900
    %v902 = vpop.f32.mrb[0].mxu0
    %903 = vmatprep.mubr.f32.mxu0 0.0
    %904 = vmatmul.mubr.f32.gmra.mrb[0].mxu0 %v824
    %v905 = vpop.f32.mrb[0].mxu0
    %v906 = vadd.f32 %v816, %v905
    %v907 = vpop.f32.mrb[0].mxu0
    %908 = vmatprep.mubr.f32.mxu0 0.0
    %909 = vmatmul.mubr.f32.gmra.mrb[0].mxu0 %v827
    %v910 = vpop.f32.mrb[0].mxu0
    %v911 = vadd.f32 %v816, %v910
    %v912 = vpop.f32.mrb[0].mxu0
    %913 = vdwg.mxu0
    %v914 = vadd.f32 %v27, %v896
    %v915 = vadd.f32 %v28, %v901
    %v916 = vadd.f32 %v29, %v906
    %v917 = vadd.f32 %v30, %v911
    %v918 = vsel %vm41, %v914, 0.0
    %v919 = vsel %vm41, %v915, 0.0
    %v920 = vadd.f32 %v918, %v919
    %v921 = vsel %vm41, %v916, 0.0
    %v922 = vadd.f32 %v920, %v921
    %v923 = vsel %vm41, %v917, 0.0
    %v924 = vadd.f32 %v922, %v923
    %v925 = vrot.slane %v924, 4
    %v926 = vadd.f32 %v924, %v925
    %v927 = vrot.slane %v926, 2
    %v928 = vadd.f32 %v926, %v927
    %v929 = vrot.slane %v928, 1
    %v930 = vadd.f32 %v928, %v929
    %v931 = vrcp.pop 32.0
    %v932 = vmul.f32 %v930, %v931
    %v933 = vsub.f32 %v914, %v932
    %v934 = vsub.f32 %v915, %v932
    %v935 = vsub.f32 %v916, %v932
    %v936 = vsub.f32 %v917, %v932
    %v937 = vmul.f32 %v933, %v933
    %v938 = vmul.f32 %v934, %v934
    %v939 = vmul.f32 %v935, %v935
    %v940 = vmul.f32 %v936, %v936
    %v941 = vsel %vm41, %v937, 0.0
    %v942 = vsel %vm41, %v938, 0.0
    %v943 = vadd.f32 %v941, %v942
    %v944 = vsel %vm41, %v939, 0.0
    %v945 = vadd.f32 %v943, %v944
    %v946 = vsel %vm41, %v940, 0.0
    %v947 = vadd.f32 %v945, %v946
    %v948 = vrot.slane %v947, 4
    %v949 = vadd.f32 %v947, %v948
    %v950 = vrot.slane %v949, 2
    %v951 = vadd.f32 %v949, %v950
    %v952 = vrot.slane %v951, 1
    %v953 = vadd.f32 %v951, %v952
    %v954 = vmul.f32 %v953, %v931
    %v955 = vadd.f32 %v954, 1e-05
    %v956 = vrsqrt.pop %v955
    %v957 = vmul.f32 %v933, %v956
    %v958 = vmul.f32 %v934, %v956
    %v959 = vmul.f32 %v935, %v956
    %v960 = vmul.f32 %v936, %v956
    %v961 = vlaneseq
    %v962 = vshrl.u32 %v961, 7
    %v963 = vsub.s32 4, %v962
    %v964 = vrot.slane %v31, %v963
    %v965 = vmul.f32 %v957, %v964
    %v966 = vmul.f32 %v958, %v964
    %v967 = vmul.f32 %v959, %v964
    %v968 = vmul.f32 %v960, %v964
    %v969 = vlaneseq
    %v970 = vshrl.u32 %v969, 7
    %v971 = vsub.s32 5, %v970
    %v972 = vrot.slane %v31, %v971
    %v973 = vadd.f32 %v965, %v972
    %v974 = vadd.f32 %v966, %v972
    %v975 = vadd.f32 %v967, %v972
    %v976 = vadd.f32 %v968, %v972
    %v977 = vld [vmem:[%s4] sm:$0xff]
    %v978 = vld [vmem:[%s4 + $0x8] sm:$0xff]
    %v979 = vld [vmem:[%s4 + $0x10] sm:$0xff]
    %v980 = vld [vmem:[%s4 + $0x18] sm:$0xff]
    %v981 = vlaneseq
    %v982 = vshrl.u32 %v981, 7
    %v983 = vsub.s32 2, %v982
    %v984 = vrot.slane %v31, %v983
    %v986 = vsel %vm41, %v973, 0
    %v989 = vsel %vm41, %v974, 0
    %v992 = vsel %vm41, %v975, 0
    %v995 = vsel %vm41, %v976, 0
    %997 = vmatprep.subr.mxu0 0.0
    %998 = vmatpush1.msra.mxu0 %v977
    %999 = vmatprep.subr.mxu0 0.0
    %1000 = vmatpush1.msra.mxu0 %v978
    %1001 = vmatprep.subr.mxu0 0.0
    %1002 = vmatpush1.msra.mxu0 %v979
    %1003 = vmatprep.subr.mxu0 0.0
    %1004 = vmatpush1.msra.mxu0 %v980
    %1005 = vmatprep.subr.mxu0 0.0
    %1006 = vmatpush1.msra.mxu0 0.0
    %1007 = vmatprep.subr.mxu0 0.0
    %1008 = vmatpush1.msra.mxu0 0.0
    %1009 = vmatprep.subr.mxu0 0.0
    %1010 = vmatpush1.msra.mxu0 0.0
    %1011 = vmatprep.subr.mxu0 0.0
    %1012 = vmatpush1.msra.mxu0 0.0
    %1013 = vmatprep.subr.mxu0 0.0
    %1014 = vmatpush1.msra.mxu0 0.0
    %1015 = vmatprep.subr.mxu0 0.0
    %1016 = vmatpush1.msra.mxu0 0.0
    %1017 = vmatprep.subr.mxu0 0.0
    %1018 = vmatpush1.msra.mxu0 0.0
    %1019 = vmatprep.subr.mxu0 0.0
    %1020 = vmatpush1.msra.mxu0 0.0
    %1021 = vmatprep.subr.mxu0 0.0
    %1022 = vmatpush1.msra.mxu0 0.0
    %1023 = vmatprep.subr.mxu0 0.0
    %1024 = vmatpush1.msra.mxu0 0.0
    %1025 = vmatprep.subr.mxu0 0.0
    %1026 = vmatpush1.msra.mxu0 0.0
    %1027 = vmatprep.subr.mxu0 0.0
    %1028 = vmatpush1.msra.mxu0 0.0
    %1029 = vmatprep.subr.mxu0 0.0
    %1030 = vmatpush1.msra.mxu0 0.0
    %1031 = vmatprep.subr.mxu0 0.0
    %1032 = vmatpush1.msra.mxu0 0.0
    %1033 = vmatprep.subr.mxu0 0.0
    %1034 = vmatpush1.msra.mxu0 0.0
    %1035 = vmatprep.subr.mxu0 0.0
    %1036 = vmatpush1.msra.mxu0 0.0
    %1037 = vmatprep.subr.mxu0 0.0
    %1038 = vmatpush1.msra.mxu0 0.0
    %1039 = vmatprep.subr.mxu0 0.0
    %1040 = vmatpush1.msra.mxu0 0.0
    %1041 = vmatprep.subr.mxu0 0.0
    %1042 = vmatpush1.msra.mxu0 0.0
    %1043 = vmatprep.subr.mxu0 0.0
    %1044 = vmatpush1.msra.mxu0 0.0
    %1045 = vmatprep.subr.mxu0 0.0
    %1046 = vmatpush1.msra.mxu0 0.0
    %1047 = vmatprep.subr.mxu0 0.0
    %1048 = vmatpush1.msra.mxu0 0.0
    %1049 = vmatprep.subr.mxu0 0.0
    %1050 = vmatpush1.msra.mxu0 0.0
    %1051 = vmatprep.subr.mxu0 0.0
    %1052 = vmatpush1.msra.mxu0 0.0
    %1053 = vmatprep.subr.mxu0 0.0
    %1054 = vmatpush1.msra.mxu0 0.0
    %1055 = vmatprep.subr.mxu0 0.0
    %1056 = vmatpush1.msra.mxu0 0.0
    %1057 = vmatprep.subr.mxu0 0.0
    %1058 = vmatpush1.msra.mxu0 0.0
    %1059 = vmatprep.subr.mxu0 0.0
    %1060 = vmatpush1.msra.mxu0 0.0
    %1061 = vmatprep.mubr.f32.mxu0 0.0
    %1062 = vmatmul.mubr.f32.gmra.mrb[0].mxu0 %v986
    %v1063 = vpop.f32.mrb[0].mxu0
    %v1064 = vadd.f32 %v984, %v1063
    %v1065 = vpop.f32.mrb[0].mxu0
    %1066 = vmatprep.mubr.f32.mxu0 0.0
    %1067 = vmatmul.mubr.f32.gmra.mrb[0].mxu0 %v989
    %v1068 = vpop.f32.mrb[0].mxu0
    %v1069 = vadd.f32 %v984, %v1068
    %v1070 = vpop.f32.mrb[0].mxu0
    %1071 = vmatprep.mubr.f32.mxu0 0.0
    %1072 = vmatmul.mubr.f32.gmra.mrb[0].mxu0 %v992
    %v1073 = vpop.f32.mrb[0].mxu0
    %v1074 = vadd.f32 %v984, %v1073
    %v1075 = vpop.f32.mrb[0].mxu0
    %1076 = vmatprep.mubr.f32.mxu0 0.0
    %1077 = vmatmul.mubr.f32.gmra.mrb[0].mxu0 %v995
    %v1078 = vpop.f32.mrb[0].mxu0
    %v1079 = vadd.f32 %v984, %v1078
    %v1080 = vpop.f32.mrb[0].mxu0
    %1081 = vdwg.mxu0
    %v1082 = vand.u32 2147483647, %v1064
    %v1083 = vand.u32 2147483647, %v1069
    %v1084 = vand.u32 2147483647, %v1074
    %v1085 = vand.u32 2147483647, %v1079
    %v1086 = vmul.f32 %v1082, 0.70710677
    %v1087 = vmul.f32 %v1083, 0.70710677
    %v1088 = vmul.f32 %v1084, 0.70710677
    %v1089 = vmul.f32 %v1085, 0.70710677
    %v1090 = vmul.f32 %v1086, 0.3275911
    %v1091 = vmul.f32 %v1087, 0.3275911
    %v1092 = vmul.f32 %v1088, 0.3275911
    %v1093 = vmul.f32 %v1089, 0.3275911
    %v1094 = vadd.f32 %v1090, 1.0
    %v1095 = vadd.f32 %v1091, 1.0
    %v1096 = vadd.f32 %v1092, 1.0
    %v1097 = vadd.f32 %v1093, 1.0
    %v1098 = vrcp.pop %v1094
    %v1099 = vmul.f32 1.0, %v1098
    %v1100 = vrcp.pop %v1095
    %v1101 = vmul.f32 1.0, %v1100
    %v1102 = vrcp.pop %v1096
    %v1103 = vmul.f32 1.0, %v1102
    %v1104 = vrcp.pop %v1097
    %v1105 = vmul.f32 1.0, %v1104
    %v1106 = vmul.f32 %v1099, 1.0614054
    %v1107 = vmul.f32 %v1101, 1.0614054
    %v1108 = vmul.f32 %v1103, 1.0614054
    %v1109 = vmul.f32 %v1105, 1.0614054
    %v1110 = vsub.f32 %v1106, 1.4531521
    %v1111 = vsub.f32 %v1107, 1.4531521
    %v1112 = vsub.f32 %v1108, 1.4531521
    %v1113 = vsub.f32 %v1109, 1.4531521
    %v1114 = vmul.f32 %v1110, %v1099
    %v1115 = vmul.f32 %v1111, %v1101
    %v1116 = vmul.f32 %v1112, %v1103
    %v1117 = vmul.f32 %v1113, %v1105
    %v1118 = vadd.f32 %v1114, 1.4214138
    %v1119 = vadd.f32 %v1115, 1.4214138
    %v1120 = vadd.f32 %v1116, 1.4214138
    %v1121 = vadd.f32 %v1117, 1.4214138
    %v1122 = vmul.f32 %v1118, %v1099
    %v1123 = vmul.f32 %v1119, %v1101
    %v1124 = vmul.f32 %v1120, %v1103
    %v1125 = vmul.f32 %v1121, %v1105
    %v1126 = vsub.f32 %v1122, 0.28449672
    %v1127 = vsub.f32 %v1123, 0.28449672
    %v1128 = vsub.f32 %v1124, 0.28449672
    %v1129 = vsub.f32 %v1125, 0.28449672
    %v1130 = vmul.f32 %v1126, %v1099
    %v1131 = vmul.f32 %v1127, %v1101
    %v1132 = vmul.f32 %v1128, %v1103
    %v1133 = vmul.f32 %v1129, %v1105
    %v1134 = vadd.f32 %v1130, 0.2548296
    %v1135 = vadd.f32 %v1131, 0.2548296
    %v1136 = vadd.f32 %v1132, 0.2548296
    %v1137 = vadd.f32 %v1133, 0.2548296
    %v1138 = vmul.f32 %v1134, %v1099
    %v1139 = vmul.f32 %v1135, %v1101
    %v1140 = vmul.f32 %v1136, %v1103
    %v1141 = vmul.f32 %v1137, %v1105
    %v1142 = vsub.f32 0.0, %v1086
    %v1143 = vsub.f32 0.0, %v1087
    %v1144 = vsub.f32 0.0, %v1088
    %v1145 = vsub.f32 0.0, %v1089
    %v1146 = vmul.f32 %v1142, %v1086
    %v1147 = vmul.f32 %v1143, %v1087
    %v1148 = vmul.f32 %v1144, %v1088
    %v1149 = vmul.f32 %v1145, %v1089
    %v1150 = vmul.f32 %v1146, 1.442695
    %v1151 = vpow.pop %v1150
    %v1152 = vmul.f32 %v1147, 1.442695
    %v1153 = vpow.pop %v1152
    %v1154 = vmul.f32 %v1148, 1.442695
    %v1155 = vpow.pop %v1154
    %v1156 = vmul.f32 %v1149, 1.442695
    %v1157 = vpow.pop %v1156
    %v1158 = vmul.f32 %v1138, %v1151
    %v1159 = vmul.f32 %v1139, %v1153
    %v1160 = vmul.f32 %v1140, %v1155
    %v1161 = vmul.f32 %v1141, %v1157
    %v1162 = vsub.f32 1.0, %v1158
    %v1163 = vsub.f32 1.0, %v1159
    %v1164 = vsub.f32 1.0, %v1160
    %v1165 = vsub.f32 1.0, %v1161
    %v1166 = vmul.f32 %v1064, 0.5
    %v1167 = vmul.f32 %v1069, 0.5
    %v1168 = vmul.f32 %v1074, 0.5
    %v1169 = vmul.f32 %v1079, 0.5
    %v1170 = vmul.f32 %v1082, 0.5
    %v1171 = vmul.f32 %v1083, 0.5
    %v1172 = vmul.f32 %v1084, 0.5
    %v1173 = vmul.f32 %v1085, 0.5
    %v1174 = vmul.f32 %v1170, %v1162
    %v1175 = vmul.f32 %v1171, %v1163
    %v1176 = vmul.f32 %v1172, %v1164
    %v1177 = vmul.f32 %v1173, %v1165
    %v1178 = vadd.f32 %v1166, %v1174
    %v1179 = vadd.f32 %v1167, %v1175
    %v1180 = vadd.f32 %v1168, %v1176
    %v1181 = vadd.f32 %v1169, %v1177
    %v1182 = vld [vmem:[%s5] sm:$0xff]
    %v1183 = vld [vmem:[%s5 + $0x8] sm:$0xff]
    %v1184 = vld [vmem:[%s5 + $0x10] sm:$0xff]
    %v1185 = vld [vmem:[%s5 + $0x18] sm:$0xff]
    %v1186 = vld [vmem:[%s5 + $0x20] sm:$0xff]
    %v1187 = vld [vmem:[%s5 + $0x28] sm:$0xff]
    %v1188 = vld [vmem:[%s5 + $0x30] sm:$0xff]
    %v1189 = vld [vmem:[%s5 + $0x38] sm:$0xff]
    %v1190 = vlaneseq
    %v1191 = vshrl.u32 %v1190, 7
    %v1192 = vsub.s32 3, %v1191
    %v1193 = vrot.slane %v31, %v1192
    %vm1194 = vcmask 523264
    %v1196 = vsel %vm1194, %v1178, 0
    %v1199 = vsel %vm1194, %v1179, 0
    %v1202 = vsel %vm1194, %v1180, 0
    %v1205 = vsel %vm1194, %v1181, 0
    %1207 = vmatprep.subr.mxu0 0.0
    %1208 = vmatpush1.msra.mxu0 %v1182
    %1209 = vmatprep.subr.mxu0 0.0
    %1210 = vmatpush1.msra.mxu0 %v1183
    %1211 = vmatprep.subr.mxu0 0.0
    %1212 = vmatpush1.msra.mxu0 %v1184
    %1213 = vmatprep.subr.mxu0 0.0
    %1214 = vmatpush1.msra.mxu0 %v1185
    %1215 = vmatprep.subr.mxu0 0.0
    %1216 = vmatpush1.msra.mxu0 %v1186
    %1217 = vmatprep.subr.mxu0 0.0
    %1218 = vmatpush1.msra.mxu0 %v1187
    %1219 = vmatprep.subr.mxu0 0.0
    %1220 = vmatpush1.msra.mxu0 %v1188
    %1221 = vmatprep.subr.mxu0 0.0
    %1222 = vmatpush1.msra.mxu0 %v1189
    %1223 = vmatprep.subr.mxu0 0.0
    %1224 = vmatpush1.msra.mxu0 0.0
    %1225 = vmatprep.subr.mxu0 0.0
    %1226 = vmatpush1.msra.mxu0 0.0
    %1227 = vmatprep.subr.mxu0 0.0
    %1228 = vmatpush1.msra.mxu0 0.0
    %1229 = vmatprep.subr.mxu0 0.0
    %1230 = vmatpush1.msra.mxu0 0.0
    %1231 = vmatprep.subr.mxu0 0.0
    %1232 = vmatpush1.msra.mxu0 0.0
    %1233 = vmatprep.subr.mxu0 0.0
    %1234 = vmatpush1.msra.mxu0 0.0
    %1235 = vmatprep.subr.mxu0 0.0
    %1236 = vmatpush1.msra.mxu0 0.0
    %1237 = vmatprep.subr.mxu0 0.0
    %1238 = vmatpush1.msra.mxu0 0.0
    %1239 = vmatprep.subr.mxu0 0.0
    %1240 = vmatpush1.msra.mxu0 0.0
    %1241 = vmatprep.subr.mxu0 0.0
    %1242 = vmatpush1.msra.mxu0 0.0
    %1243 = vmatprep.subr.mxu0 0.0
    %1244 = vmatpush1.msra.mxu0 0.0
    %1245 = vmatprep.subr.mxu0 0.0
    %1246 = vmatpush1.msra.mxu0 0.0
    %1247 = vmatprep.subr.mxu0 0.0
    %1248 = vmatpush1.msra.mxu0 0.0
    %1249 = vmatprep.subr.mxu0 0.0
    %1250 = vmatpush1.msra.mxu0 0.0
    %1251 = vmatprep.subr.mxu0 0.0
    %1252 = vmatpush1.msra.mxu0 0.0
    %1253 = vmatprep.subr.mxu0 0.0
    %1254 = vmatpush1.msra.mxu0 0.0
    %1255 = vmatprep.subr.mxu0 0.0
    %1256 = vmatpush1.msra.mxu0 0.0
    %1257 = vmatprep.subr.mxu0 0.0
    %1258 = vmatpush1.msra.mxu0 0.0
    %1259 = vmatprep.subr.mxu0 0.0
    %1260 = vmatpush1.msra.mxu0 0.0
    %1261 = vmatprep.subr.mxu0 0.0
    %1262 = vmatpush1.msra.mxu0 0.0
    %1263 = vmatprep.subr.mxu0 0.0
    %1264 = vmatpush1.msra.mxu0 0.0
    %1265 = vmatprep.subr.mxu0 0.0
    %1266 = vmatpush1.msra.mxu0 0.0
    %1267 = vmatprep.subr.mxu0 0.0
    %1268 = vmatpush1.msra.mxu0 0.0
    %1269 = vmatprep.subr.mxu0 0.0
    %1270 = vmatpush1.msra.mxu0 0.0
    %1271 = vmatprep.mubr.f32.mxu0 0.0
    %1272 = vmatmul.mubr.f32.gmra.mrb[0].mxu0 %v1196
    %v1273 = vpop.f32.mrb[0].mxu0
    %v1274 = vadd.f32 %v1193, %v1273
    %v1275 = vpop.f32.mrb[0].mxu0
    %1276 = vmatprep.mubr.f32.mxu0 0.0
    %1277 = vmatmul.mubr.f32.gmra.mrb[0].mxu0 %v1199
    %v1278 = vpop.f32.mrb[0].mxu0
    %v1279 = vadd.f32 %v1193, %v1278
    %v1280 = vpop.f32.mrb[0].mxu0
    %1281 = vmatprep.mubr.f32.mxu0 0.0
    %1282 = vmatmul.mubr.f32.gmra.mrb[0].mxu0 %v1202
    %v1283 = vpop.f32.mrb[0].mxu0
    %v1284 = vadd.f32 %v1193, %v1283
    %v1285 = vpop.f32.mrb[0].mxu0
    %1286 = vmatprep.mubr.f32.mxu0 0.0
    %1287 = vmatmul.mubr.f32.gmra.mrb[0].mxu0 %v1205
    %v1288 = vpop.f32.mrb[0].mxu0
    %v1289 = vadd.f32 %v1193, %v1288
    %v1290 = vpop.f32.mrb[0].mxu0
    %1291 = vdwg.mxu0
    %v1292 = vadd.f32 %v973, %v1274
    %v1293 = vadd.f32 %v974, %v1279
    %v1294 = vadd.f32 %v975, %v1284
    %v1295 = vadd.f32 %v976, %v1289
    %v1296 = vsel %vm41, %v1292, 0.0
    %v1297 = vsel %vm41, %v1293, 0.0
    %v1298 = vadd.f32 %v1296, %v1297
    %v1299 = vsel %vm41, %v1294, 0.0
    %v1300 = vadd.f32 %v1298, %v1299
    %v1301 = vsel %vm41, %v1295, 0.0
    %v1302 = vadd.f32 %v1300, %v1301
    %v1303 = vrot.slane %v1302, 4
    %v1304 = vadd.f32 %v1302, %v1303
    %v1305 = vrot.slane %v1304, 2
    %v1306 = vadd.f32 %v1304, %v1305
    %v1307 = vrot.slane %v1306, 1
    %v1308 = vadd.f32 %v1306, %v1307
    %v1309 = vmul.f32 %v1308, %v931
    %v1310 = vsub.f32 %v1292, %v1309
    %v1311 = vsub.f32 %v1293, %v1309
    %v1312 = vsub.f32 %v1294, %v1309
    %v1313 = vsub.f32 %v1295, %v1309
    %v1314 = vmul.f32 %v1310, %v1310
    %v1315 = vmul.f32 %v1311, %v1311
    %v1316 = vmul.f32 %v1312, %v1312
    %v1317 = vmul.f32 %v1313, %v1313
    %v1318 = vsel %vm41, %v1314, 0.0
    %v1319 = vsel %vm41, %v1315, 0.0
    %v1320 = vadd.f32 %v1318, %v1319
    %v1321 = vsel %vm41, %v1316, 0.0
    %v1322 = vadd.f32 %v1320, %v1321
    %v1323 = vsel %vm41, %v1317, 0.0
    %v1324 = vadd.f32 %v1322, %v1323
    %v1325 = vrot.slane %v1324, 4
    %v1326 = vadd.f32 %v1324, %v1325
    %v1327 = vrot.slane %v1326, 2
    %v1328 = vadd.f32 %v1326, %v1327
    %v1329 = vrot.slane %v1328, 1
    %v1330 = vadd.f32 %v1328, %v1329
    %v1331 = vmul.f32 %v1330, %v931
    %v1332 = vadd.f32 %v1331, 1e-05
    %v1333 = vrsqrt.pop %v1332
    %v1334 = vmul.f32 %v1310, %v1333
    %v1335 = vmul.f32 %v1311, %v1333
    %v1336 = vmul.f32 %v1312, %v1333
    %v1337 = vmul.f32 %v1313, %v1333
    %v1338 = vlaneseq
    %v1339 = vshrl.u32 %v1338, 7
    %v1340 = vsub.s32 6, %v1339
    %v1341 = vrot.slane %v31, %v1340
    %v1342 = vmul.f32 %v1334, %v1341
    %v1343 = vmul.f32 %v1335, %v1341
    %v1344 = vmul.f32 %v1336, %v1341
    %v1345 = vmul.f32 %v1337, %v1341
    %v1346 = vlaneseq
    %v1347 = vshrl.u32 %v1346, 7
    %v1348 = vsub.s32 7, %v1347
    %v1349 = vrot.slane %v31, %v1348
    %v1350 = vadd.f32 %v1342, %v1349
    %v1351 = vadd.f32 %v1343, %v1349
    %v1352 = vadd.f32 %v1344, %v1349
    %v1353 = vadd.f32 %v1345, %v1349
    %1354 = vst.msk [vmem:[#allocation2] sm:$0xff] %vm41, %v1350
    %1355 = vst.msk [vmem:[#allocation2 + $0x8] sm:$0xff] %vm41, %v1351
    %1356 = vst.msk [vmem:[#allocation2 + $0x10] sm:$0xff] %vm41, %v1352
    %1357 = vst.msk [vmem:[#allocation2 + $0x18] sm:$0xff] %vm41, %v1353
    // Predicated region
    $region30: #{tst_encoder_layer.1} parent=1 // pred_check
      _
    $region31: #{tst_encoder_layer.1} parent=1 // pred_check_branch
      %1359 = sbr.rel (0) target = $region33
    $region32: #{tst_encoder_layer.1} parent=1 // pred_region
      %s1361 = ssub.s32 512, 512
      %1362 = vsyncadd [#allocation3], %s1361
      %s1363 = sshll.u32 [#allocation2], 4
      %s1364 = int_to_ptr.vmem [resolvable:$true] %s1363
      %1369 = dma.vmem_to_hbm [thread:$0]  %s1364, 512, %s7, [#allocation3], 128, 128, 8
    $region33: #{tst_encoder_layer.1} parent=1 // pred_fallthru
      _
    // Predicated region
    $region34: #{tst_encoder_layer.1} parent=1 // pred_check
      _
    $region35: #{tst_encoder_layer.1} parent=1 // pred_check_branch
      %1371 = sbr.rel (0) target = $region37
    $region36: #{tst_encoder_layer.1} parent=1 // pred_region
      %1372 = dma.done [#allocation3], 512
    $region37: #{tst_encoder_layer.1} parent=1 // pred_fallthru
      _
    %1373 = vsyncpa [#allocation3], 1

</llo_original>
